<compile_context>
chip_gen: v5e
topology: v5e:2x2
jax: 0.10.0
libtpu: 0.0.40
codegen_flags: <defaults>
</compile_context>

<pallas_src>
import functools

import jax
import jax.numpy as jnp
from jax import lax
from jax.experimental import pallas as pl
from jax.experimental.pallas import tpu as pltpu


def _round_up(x, m):
    return ((x + m - 1) // m) * m


# ----------------------------- fused Pallas kernel ---------------------------------

def _fused_encoder_kernel(patches_ref, w0_ref, s0_ref, wh_ref, sh_ref, wl_ref, sl_ref,
                          mask_ref, o_ref, act_a, act_b, stage, *, n_hidden, h1, wp):
    """One batch element.  Activation scratch layout (per channel, flat length (h1+4)*wp):
         [0, wp)              guard row (zero)
         [wp, 2*wp)           top zero-pad row of the "same" conv
         [2*wp, (h1+2)*wp)    h1 data rows, each wp wide; data in cols 1..w1, zeros elsewhere
         [(h1+2)*wp, end)     bottom zero-pad row + guard row (zero)
    """
    L = h1 * wp
    c0 = act_a.shape[0]
    mask = mask_ref[...]                      # (1, L) f32 0/1 : keeps cols 1..w1 of each wp-row

    def store_act(act_ref, slab_f32):
        act_ref[:, 0:2 * wp] = jnp.zeros((c0, 2 * wp), act_ref.dtype)        # guard + top pad
        act_ref[:, 2 * wp + L:] = jnp.zeros((c0, 2 * wp), act_ref.dtype)     # bottom pad + guard
        act_ref[:, 2 * wp:2 * wp + L] = (slab_f32 * mask).astype(act_ref.dtype)

    # ---- block 0 (stride-2 input conv): wrapper im2col, one (C0, K0p) @ (K0p, L) matmul ----
    y = jnp.dot(w0_ref[...], patches_ref[...], preferred_element_type=jnp.float32)
    y = jnp.clip(y + s0_ref[...], 0.0, 20.0)                                 # Hardtanh(0, 20)
    store_act(act_a, y)

    # ---- stride-1 3x3 blocks: stage 9 shifted tap slices, one K = 9*C0 matmul each ----
    taps = [(a, b) for a in range(3) for b in range(3)]

    def stride1_layer(act_in, w, shift, *, is_last, act_out=None):
        for t, (th, tw) in enumerate(taps):
            start = (th + 1) * wp + (tw - 1)                                 # static offset
            stage[t * c0:(t + 1) * c0, :] = act_in[:, start:start + L]
        acc = jnp.dot(w, stage[...], preferred_element_type=jnp.float32)     # (Cout, 9*C0)@(9*C0, L)
        yy = jnp.clip(acc + shift, 0.0, 20.0)                                # Hardtanh(0, 20)
        if is_last:
            o_ref[...] = yy.astype(o_ref.dtype)       # junk/pad cols sliced off in the wrapper
        else:
            store_act(act_out, yy)

    acts = (act_a, act_b)
    cur = 0
    for i in range(n_hidden):
        stride1_layer(acts[cur], wh_ref[i], sh_ref[i], is_last=False, act_out=acts[1 - cur])
        cur = 1 - cur
    stride1_layer(acts[cur], wl_ref[...], sl_ref[...], is_last=True)


# ------------------------------ wrapper / forward -----------------------------------

def _bn_fold_into_weights(p):
    """Fold eval-mode BN (+ conv bias) into per-out-channel scaled weights and a shift."""
    eps = 1e-5
    scale = p["gamma"] / jnp.sqrt(p["running_var"] + eps)                    # (Cout,)
    shift = p["beta"] + (p["bias"] - p["running_mean"]) * scale              # (Cout,)
    w = p["weight"] * scale[:, None, None, None]                             # f32 scaled weights
    return w, shift


def encoder_forward(cfg, params, spectrogram):
    """spectrogram: (B, 1, Freq, Time) NCHW -> (B, Cout*Hout, Wout) after flatten(1, 2)."""
    B, c_in, H, W = spectrogram.shape
    n_hidden = cfg.hidden_conv_num
    c_hidden = cfg.hidden_channels
    c_out = cfg.output_channels

    k_h, k_w = cfg.input_kernel
    s_h, s_w = cfg.input_stride
    p_h, p_w = cfg.input_padding
    assert list(cfg.hidden_kernel) == [3, 3] and list(cfg.output_kernel) == [3, 3]
    assert list(cfg.hidden_stride) == [1, 1] and list(cfg.output_stride) == [1, 1]
    assert list(cfg.hidden_padding) == [1, 1] and list(cfg.output_padding) == [1, 1]

    h1 = (H + 2 * p_h - k_h) // s_h + 1
    w1 = (W + 2 * p_w - k_w) // s_w + 1
    wp = _round_up(w1 + 2, 128)               # padded row width: lane-dense multiple of 128
    L = h1 * wp

    # ---- block-0 im2col patches, built directly in the padded (wp-wide row) layout ----
    xp = jnp.pad(spectrogram, ((0, 0), (0, 0), (p_h, p_h), (p_w, p_w)))
    slabs = []
    for a in range(k_h):
        for b in range(k_w):
            slabs.append(xp[:, :, a:a + s_h * (h1 - 1) + 1:s_h,
                            b:b + s_w * (w1 - 1) + 1:s_w])                   # (B, Cin, h1, w1)
    patches = jnp.stack(slabs, axis=2).reshape(B, c_in * k_h * k_w, h1, w1)
    k0 = c_in * k_h * k_w
    k0p = _round_up(k0, 16)                                                  # bf16 sublane-aligned K
    patches = jnp.pad(patches, ((0, 0), (0, k0p - k0), (0, 0), (1, wp - w1 - 1)))
    patches = patches.reshape(B, k0p, L).astype(jnp.bfloat16)

    # ---- fold BN into weights per block (scale in weights, shift applied in-kernel) ----
    w0, s0 = _bn_fold_into_weights(params[0])
    w0 = jnp.pad(w0.reshape(c_hidden, k0), ((0, 0), (0, k0p - k0))).astype(jnp.bfloat16)
    s0 = s0.reshape(c_hidden, 1).astype(jnp.float32)

    def flat_stride1_w(w):   # (Cout, Cin, 3, 3) -> (Cout, 9*Cin); K ordered (kh, kw, cin)
        return jnp.transpose(w, (0, 2, 3, 1)).reshape(w.shape[0], -1)

    k1 = 9 * c_hidden
    if n_hidden > 0:
        wh_list, sh_list = [], []
        for i in range(n_hidden):
            w, s = _bn_fold_into_weights(params[1 + i])
            wh_list.append(flat_stride1_w(w))
            sh_list.append(s.reshape(c_hidden, 1))
        wh = jnp.stack(wh_list).astype(jnp.bfloat16)                         # (n_hidden, C0, 9*C0)
        sh = jnp.stack(sh_list).astype(jnp.float32)                          # (n_hidden, C0, 1)
    else:
        wh = jnp.zeros((1, c_hidden, k1), jnp.bfloat16)                      # unused dummy
        sh = jnp.zeros((1, c_hidden, 1), jnp.float32)
    nh_dim = max(n_hidden, 1)

    wl_f, sl_f = _bn_fold_into_weights(params[-1])
    cl_p = _round_up(c_out, 8)                                               # full f32 sublanes
    wl = jnp.pad(flat_stride1_w(wl_f), ((0, cl_p - c_out), (0, 0))).astype(jnp.bfloat16)
    sl = jnp.pad(sl_f.reshape(c_out, 1), ((0, cl_p - c_out), (0, 0))).astype(jnp.float32)

    # 0/1 column mask: keeps cols 1..w1 of every wp-wide row (the next layer's zero padding)
    col = jnp.arange(L, dtype=jnp.int32) % wp
    mask = ((col >= 1) & (col <= w1)).astype(jnp.float32).reshape(1, L)

    kernel = functools.partial(_fused_encoder_kernel, n_hidden=n_hidden, h1=h1, wp=wp)

    flops = 2 * B * L * (c_hidden * k0p + n_hidden * c_hidden * k1 + cl_p * k1)
    bytes_accessed = int(patches.size * 2 + w0.size * 2 + wh.size * 2 + wl.size * 2
                         + (s0.size + sh.size + sl.size + mask.size) * 4
                         + B * cl_p * L * 4)

    out = pl.pallas_call(
        kernel,
        out_shape=jax.ShapeDtypeStruct((B, cl_p, L), jnp.float32),
        grid=(B,),
        in_specs=[
            pl.BlockSpec((None, k0p, L), lambda b: (b, 0, 0)),               # per-batch patches
            pl.BlockSpec((c_hidden, k0p), lambda b: (0, 0)),                 # block-0 weights
            pl.BlockSpec((c_hidden, 1), lambda b: (0, 0)),                   # block-0 shift
            pl.BlockSpec((nh_dim, c_hidden, k1), lambda b: (0, 0, 0)),       # hidden weights
            pl.BlockSpec((nh_dim, c_hidden, 1), lambda b: (0, 0, 0)),        # hidden shifts
            pl.BlockSpec((cl_p, k1), lambda b: (0, 0)),                      # output weights
            pl.BlockSpec((cl_p, 1), lambda b: (0, 0)),                       # output shift
            pl.BlockSpec((1, L), lambda b: (0, 0)),                          # column mask
        ],
        out_specs=pl.BlockSpec((None, cl_p, L), lambda b: (b, 0, 0)),
        scratch_shapes=[
            pltpu.VMEM((c_hidden, (h1 + 4) * wp), jnp.bfloat16),             # activation ping
            pltpu.VMEM((c_hidden, (h1 + 4) * wp), jnp.bfloat16),             # activation pong
            pltpu.VMEM((k1, L), jnp.bfloat16),                               # 9-tap staging buf
        ],
        compiler_params=pltpu.CompilerParams(dimension_semantics=("parallel",)),
        cost_estimate=pl.CostEstimate(flops=flops, transcendentals=0,
                                      bytes_accessed=bytes_accessed),
    )(patches, w0, s0, wh, sh, wl, sl, mask)

    # free-view reshape; strip the channel pad and the left/right zero-pad + junk columns
    out = out.reshape(B, cl_p, h1, wp)[:, :c_out, :, 1:1 + w1]
    return out.reshape(B, c_out * h1, w1)                                    # flatten(1, 2)


# ------------------------------ config / params -------------------------------------

class EncoderConfig:
    def __init__(self):
        self.hidden_conv_num = 1
        self.input_kernel = [3, 3]
        self.hidden_kernel = [3, 3]
        self.output_kernel = [3, 3]
        self.input_padding = [1, 1]
        self.hidden_padding = [1, 1]
        self.output_padding = [1, 1]
        self.input_stride = [2, 2]
        self.hidden_stride = [1, 1]
        self.output_stride = [1, 1]
        self.hidden_channels = 8
        self.output_channels = 4


def init_params(cfg: EncoderConfig, key):
    """Deterministic synthetic parameters (conv weight/bias + BN gamma/beta/running stats)."""
    def block_params(key, cin, cout, kH, kW):
        ks = jax.random.split(key, 6)
        return {
            "weight": 0.1 * jax.random.normal(ks[0], (cout, cin, kH, kW), jnp.float32),
            "bias": 0.1 * jax.random.normal(ks[1], (cout,), jnp.float32),
            "gamma": 1.0 + 0.1 * jax.random.normal(ks[2], (cout,), jnp.float32),
            "beta": 0.1 * jax.random.normal(ks[3], (cout,), jnp.float32),
            "running_mean": 0.1 * jax.random.normal(ks[4], (cout,), jnp.float32),
            "running_var": jax.random.uniform(ks[5], (cout,), jnp.float32, 0.5, 1.5),
        }

    keys = jax.random.split(key, cfg.hidden_conv_num + 2)
    params = [block_params(keys[0], 1, cfg.hidden_channels, *cfg.input_kernel)]
    for i in range(cfg.hidden_conv_num):
        params.append(block_params(keys[1 + i], cfg.hidden_channels,
                                   cfg.hidden_channels, *cfg.hidden_kernel))
    params.append(block_params(keys[-1], cfg.hidden_channels,
                               cfg.output_channels, *cfg.output_kernel))
    return params


# --------------------------- pure-JAX reference ---------------------------------

def encoder_reference(cfg: EncoderConfig, params, spectrogram):
    def block(x, p, stride, padding):
        y = lax.conv_general_dilated(
            x, p["weight"], window_strides=tuple(stride),
            padding=[(padding[0], padding[0]), (padding[1], padding[1])],
            dimension_numbers=("NCHW", "OIHW", "NCHW"))
        y = y + p["bias"][None, :, None, None]
        eps = 1e-5
        y = (y - p["running_mean"][None, :, None, None]) / jnp.sqrt(
            p["running_var"][None, :, None, None] + eps)
        y = y * p["gamma"][None, :, None, None] + p["beta"][None, :, None, None]
        return jnp.clip(y, 0.0, 20.0)

    x = block(spectrogram, params[0], cfg.input_stride, cfg.input_padding)
    for i in range(cfg.hidden_conv_num):
        x = block(x, params[1 + i], cfg.hidden_stride, cfg.hidden_padding)
    x = block(x, params[-1], cfg.output_stride, cfg.output_padding)
    B, C, H, W = x.shape
    return x.reshape(B, C * H, W)


# ---------------------------------------------------------------------------------

if __name__ == "__main__":
    cfg = EncoderConfig()
    key = jax.random.PRNGKey(0)
    k_param, k_input = jax.random.split(key)

    params = init_params(cfg, k_param)
    spectrogram = jax.random.normal(k_input, (2, 1, 16, 16), jnp.float32)  # (B, 1, Freq, Time)

    out = jax.jit(functools.partial(encoder_forward, cfg))(params, spectrogram)
    out = jax.block_until_ready(out)

    ref = encoder_reference(cfg, params, spectrogram)
    assert out.shape == ref.shape == (2, cfg.output_channels * 8, 8), out.shape
    # bf16 MXU inputs / bf16 VMEM intermediates (f32 accumulation) -> loosened tolerance.
    assert jnp.max(jnp.abs(out - ref)) < 5e-2, float(jnp.max(jnp.abs(out - ref)))

    print("KERNEL_OK")
</pallas_src>

<mosaic_0001>
module attributes {stable_mosaic.version = 11 : i64} {
  func.func @_fused_encoder_kernel(%arg0: i32, %arg1: memref<1x16x1024xbf16, #tpu.memory_space<vmem>>, %arg2: memref<8x16xbf16, #tpu.memory_space<vmem>>, %arg3: memref<8x1xf32, #tpu.memory_space<vmem>>, %arg4: memref<1x8x72xbf16, #tpu.memory_space<vmem>>, %arg5: memref<1x8x1xf32, #tpu.memory_space<vmem>>, %arg6: memref<8x72xbf16, #tpu.memory_space<vmem>>, %arg7: memref<8x1xf32, #tpu.memory_space<vmem>>, %arg8: memref<1x1024xf32, #tpu.memory_space<vmem>>, %arg9: memref<1x8x1024xf32, #tpu.memory_space<vmem>>, %arg10: memref<8x1536xbf16, #tpu.memory_space<vmem>>, %arg11: memref<8x1536xbf16, #tpu.memory_space<vmem>>, %arg12: memref<72x1024xbf16, #tpu.memory_space<vmem>>) attributes {dimension_semantics = [#tpu.dimension_semantics<parallel>], iteration_bounds = array<i64: 2>, scalar_prefetch = 0 : i64, scratch_operands = 3 : i64, tpu.core_type = #tpu.core_type<tc>, window_params = [{transform_indices = @transform_0, window_bounds = array<i64: 1, 16, 1024>}, {pipeline_mode = #tpu.pipeline_mode<synchronous>, transform_indices = @transform_1, window_bounds = array<i64: 8, 16>}, {pipeline_mode = #tpu.pipeline_mode<synchronous>, transform_indices = @transform_2, window_bounds = array<i64: 8, 1>}, {pipeline_mode = #tpu.pipeline_mode<synchronous>, transform_indices = @transform_3, window_bounds = array<i64: 1, 8, 72>}, {pipeline_mode = #tpu.pipeline_mode<synchronous>, transform_indices = @transform_4, window_bounds = array<i64: 1, 8, 1>}, {pipeline_mode = #tpu.pipeline_mode<synchronous>, transform_indices = @transform_5, window_bounds = array<i64: 8, 72>}, {pipeline_mode = #tpu.pipeline_mode<synchronous>, transform_indices = @transform_6, window_bounds = array<i64: 8, 1>}, {pipeline_mode = #tpu.pipeline_mode<synchronous>, transform_indices = @transform_7, window_bounds = array<i64: 1, 1024>}, {transform_indices = @transform_8, window_bounds = array<i64: 1, 8, 1024>}]} {
    %c0 = arith.constant 0 : index
    %c0_0 = arith.constant 0 : index
    %0 = vector.load %arg8[%c0, %c0_0] : memref<1x1024xf32, #tpu.memory_space<vmem>>, vector<1x1024xf32>
    %c0_1 = arith.constant 0 : index
    %c0_2 = arith.constant 0 : index
    %1 = vector.load %arg2[%c0_1, %c0_2] : memref<8x16xbf16, #tpu.memory_space<vmem>>, vector<8x16xbf16>
    %c0_3 = arith.constant 0 : index
    %c0_4 = arith.constant 0 : index
    %c0_5 = arith.constant 0 : index
    %2 = vector.load %arg1[%c0_3, %c0_4, %c0_5] : memref<1x16x1024xbf16, #tpu.memory_space<vmem>>, vector<1x16x1024xbf16>
    %3 = vector.shape_cast %2 : vector<1x16x1024xbf16> to vector<16x1024xbf16>
    %cst = arith.constant dense<0.000000e+00> : vector<8x1024xf32>
    %4 = tpu.matmul %1, %3, %cst {dimension_numbers = #tpu.dot_dimension_numbers<[1], [0], [0], [1], [0, 0, 1, 1], [], []>} : vector<8x16xbf16>, vector<16x1024xbf16>, vector<8x1024xf32> -> vector<8x1024xf32>
    %c0_6 = arith.constant 0 : index
    %c0_7 = arith.constant 0 : index
    %5 = vector.load %arg3[%c0_6, %c0_7] : memref<8x1xf32, #tpu.memory_space<vmem>>, vector<8x1xf32>
    %6 = vector.broadcast %5 : vector<8x1xf32> to vector<8x1024xf32>
    %7 = arith.addf %4, %6 : vector<8x1024xf32>
    %cst_8 = arith.constant 0.000000e+00 : f32
    %cst_9 = arith.constant 2.000000e+01 : f32
    %8 = vector.broadcast %cst_8 : f32 to vector<8x1024xf32>
    %9 = arith.maximumf %8, %7 : vector<8x1024xf32>
    %10 = vector.broadcast %cst_9 : f32 to vector<8x1024xf32>
    %11 = arith.minimumf %10, %9 : vector<8x1024xf32>
    %cst_10 = arith.constant 0.000000e+00 : bf16
    %12 = vector.broadcast %cst_10 : bf16 to vector<8x256xbf16>
    %c0_11 = arith.constant 0 : index
    %c0_12 = arith.constant 0 : index
    %13 = vector.load %arg10[%c0_11, %c0_12] : memref<8x1536xbf16, #tpu.memory_space<vmem>>, vector<8x256xbf16>
    tpu.vector_store %arg10[%c0_11, %c0_12], %12 {strides = array<i32>} : memref<8x1536xbf16, #tpu.memory_space<vmem>>, vector<8x256xbf16>,
    %cst_13 = arith.constant 0.000000e+00 : bf16
    %14 = vector.broadcast %cst_13 : bf16 to vector<8x256xbf16>
    %c0_14 = arith.constant 0 : index
    %c1280 = arith.constant 1280 : index
    %15 = vector.load %arg10[%c0_14, %c1280] : memref<8x1536xbf16, #tpu.memory_space<vmem>>, vector<8x256xbf16>
    tpu.vector_store %arg10[%c0_14, %c1280], %14 {strides = array<i32>} : memref<8x1536xbf16, #tpu.memory_space<vmem>>, vector<8x256xbf16>,
    %16 = vector.broadcast %0 : vector<1x1024xf32> to vector<8x1024xf32>
    %17 = arith.mulf %11, %16 : vector<8x1024xf32>
    %18 = arith.truncf %17 : vector<8x1024xf32> to vector<8x1024xbf16>
    %c0_15 = arith.constant 0 : index
    %c256 = arith.constant 256 : index
    %19 = vector.load %arg10[%c0_15, %c256] : memref<8x1536xbf16, #tpu.memory_space<vmem>>, vector<8x1024xbf16>
    tpu.vector_store %arg10[%c0_15, %c256], %18 {strides = array<i32>} : memref<8x1536xbf16, #tpu.memory_space<vmem>>, vector<8x1024xbf16>,
    %c0_16 = arith.constant 0 : index
    %c0_17 = arith.constant 0 : index
    %c0_18 = arith.constant 0 : index
    %20 = vector.load %arg4[%c0_16, %c0_17, %c0_18] : memref<1x8x72xbf16, #tpu.memory_space<vmem>>, vector<1x8x72xbf16>
    %21 = vector.shape_cast %20 : vector<1x8x72xbf16> to vector<8x72xbf16>
    %c0_19 = arith.constant 0 : index
    %c0_20 = arith.constant 0 : index
    %c0_21 = arith.constant 0 : index
    %22 = vector.load %arg5[%c0_19, %c0_20, %c0_21] : memref<1x8x1xf32, #tpu.memory_space<vmem>>, vector<1x8x1xf32>
    %23 = vector.shape_cast %22 : vector<1x8x1xf32> to vector<8x1xf32>
    %c0_22 = arith.constant 0 : index
    %c127 = arith.constant 127 : index
    %24 = vector.load %arg10[%c0_22, %c127] : memref<8x1536xbf16, #tpu.memory_space<vmem>>, vector<8x1024xbf16>
    %c0_23 = arith.constant 0 : index
    %c0_24 = arith.constant 0 : index
    %25 = vector.load %arg12[%c0_23, %c0_24] : memref<72x1024xbf16, #tpu.memory_space<vmem>>, vector<8x1024xbf16>
    tpu.vector_store %arg12[%c0_23, %c0_24], %24 {strides = array<i32>} : memref<72x1024xbf16, #tpu.memory_space<vmem>>, vector<8x1024xbf16>,
    %c0_25 = arith.constant 0 : index
    %c128 = arith.constant 128 : index
    %26 = vector.load %arg10[%c0_25, %c128] : memref<8x1536xbf16, #tpu.memory_space<vmem>>, vector<8x1024xbf16>
    %c8 = arith.constant 8 : index
    %c0_26 = arith.constant 0 : index
    %27 = vector.load %arg12[%c8, %c0_26] : memref<72x1024xbf16, #tpu.memory_space<vmem>>, vector<8x1024xbf16>
    tpu.vector_store %arg12[%c8, %c0_26], %26 {strides = array<i32>} : memref<72x1024xbf16, #tpu.memory_space<vmem>>, vector<8x1024xbf16>,
    %c0_27 = arith.constant 0 : index
    %c129 = arith.constant 129 : index
    %28 = vector.load %arg10[%c0_27, %c129] : memref<8x1536xbf16, #tpu.memory_space<vmem>>, vector<8x1024xbf16>
    %c16 = arith.constant 16 : index
    %c0_28 = arith.constant 0 : index
    %29 = vector.load %arg12[%c16, %c0_28] : memref<72x1024xbf16, #tpu.memory_space<vmem>>, vector<8x1024xbf16>
    tpu.vector_store %arg12[%c16, %c0_28], %28 {strides = array<i32>} : memref<72x1024xbf16, #tpu.memory_space<vmem>>, vector<8x1024xbf16>,
    %c0_29 = arith.constant 0 : index
    %c255 = arith.constant 255 : index
    %30 = vector.load %arg10[%c0_29, %c255] : memref<8x1536xbf16, #tpu.memory_space<vmem>>, vector<8x1024xbf16>
    %c24 = arith.constant 24 : index
    %c0_30 = arith.constant 0 : index
    %31 = vector.load %arg12[%c24, %c0_30] : memref<72x1024xbf16, #tpu.memory_space<vmem>>, vector<8x1024xbf16>
    tpu.vector_store %arg12[%c24, %c0_30], %30 {strides = array<i32>} : memref<72x1024xbf16, #tpu.memory_space<vmem>>, vector<8x1024xbf16>,
    %c0_31 = arith.constant 0 : index
    %c256_32 = arith.constant 256 : index
    %32 = vector.load %arg10[%c0_31, %c256_32] : memref<8x1536xbf16, #tpu.memory_space<vmem>>, vector<8x1024xbf16>
    %c32 = arith.constant 32 : index
    %c0_33 = arith.constant 0 : index
    %33 = vector.load %arg12[%c32, %c0_33] : memref<72x1024xbf16, #tpu.memory_space<vmem>>, vector<8x1024xbf16>
    tpu.vector_store %arg12[%c32, %c0_33], %32 {strides = array<i32>} : memref<72x1024xbf16, #tpu.memory_space<vmem>>, vector<8x1024xbf16>,
    %c0_34 = arith.constant 0 : index
    %c257 = arith.constant 257 : index
    %34 = vector.load %arg10[%c0_34, %c257] : memref<8x1536xbf16, #tpu.memory_space<vmem>>, vector<8x1024xbf16>
    %c40 = arith.constant 40 : index
    %c0_35 = arith.constant 0 : index
    %35 = vector.load %arg12[%c40, %c0_35] : memref<72x1024xbf16, #tpu.memory_space<vmem>>, vector<8x1024xbf16>
    tpu.vector_store %arg12[%c40, %c0_35], %34 {strides = array<i32>} : memref<72x1024xbf16, #tpu.memory_space<vmem>>, vector<8x1024xbf16>,
    %c0_36 = arith.constant 0 : index
    %c383 = arith.constant 383 : index
    %36 = vector.load %arg10[%c0_36, %c383] : memref<8x1536xbf16, #tpu.memory_space<vmem>>, vector<8x1024xbf16>
    %c48 = arith.constant 48 : index
    %c0_37 = arith.constant 0 : index
    %37 = vector.load %arg12[%c48, %c0_37] : memref<72x1024xbf16, #tpu.memory_space<vmem>>, vector<8x1024xbf16>
    tpu.vector_store %arg12[%c48, %c0_37], %36 {strides = array<i32>} : memref<72x1024xbf16, #tpu.memory_space<vmem>>, vector<8x1024xbf16>,
    %c0_38 = arith.constant 0 : index
    %c384 = arith.constant 384 : index
    %38 = vector.load %arg10[%c0_38, %c384] : memref<8x1536xbf16, #tpu.memory_space<vmem>>, vector<8x1024xbf16>
    %c56 = arith.constant 56 : index
    %c0_39 = arith.constant 0 : index
    %39 = vector.load %arg12[%c56, %c0_39] : memref<72x1024xbf16, #tpu.memory_space<vmem>>, vector<8x1024xbf16>
    tpu.vector_store %arg12[%c56, %c0_39], %38 {strides = array<i32>} : memref<72x1024xbf16, #tpu.memory_space<vmem>>, vector<8x1024xbf16>,
    %c0_40 = arith.constant 0 : index
    %c385 = arith.constant 385 : index
    %40 = vector.load %arg10[%c0_40, %c385] : memref<8x1536xbf16, #tpu.memory_space<vmem>>, vector<8x1024xbf16>
    %c64 = arith.constant 64 : index
    %c0_41 = arith.constant 0 : index
    %41 = vector.load %arg12[%c64, %c0_41] : memref<72x1024xbf16, #tpu.memory_space<vmem>>, vector<8x1024xbf16>
    tpu.vector_store %arg12[%c64, %c0_41], %40 {strides = array<i32>} : memref<72x1024xbf16, #tpu.memory_space<vmem>>, vector<8x1024xbf16>,
    %c0_42 = arith.constant 0 : index
    %c0_43 = arith.constant 0 : index
    %42 = vector.load %arg12[%c0_42, %c0_43] : memref<72x1024xbf16, #tpu.memory_space<vmem>>, vector<72x1024xbf16>
    %cst_44 = arith.constant dense<0.000000e+00> : vector<8x1024xf32>
    %43 = tpu.matmul %21, %42, %cst_44 {dimension_numbers = #tpu.dot_dimension_numbers<[1], [0], [0], [1], [0, 0, 1, 1], [], []>} : vector<8x72xbf16>, vector<72x1024xbf16>, vector<8x1024xf32> -> vector<8x1024xf32>
    %44 = vector.broadcast %23 : vector<8x1xf32> to vector<8x1024xf32>
    %45 = arith.addf %43, %44 : vector<8x1024xf32>
    %cst_45 = arith.constant 0.000000e+00 : f32
    %cst_46 = arith.constant 2.000000e+01 : f32
    %46 = vector.broadcast %cst_45 : f32 to vector<8x1024xf32>
    %47 = arith.maximumf %46, %45 : vector<8x1024xf32>
    %48 = vector.broadcast %cst_46 : f32 to vector<8x1024xf32>
    %49 = arith.minimumf %48, %47 : vector<8x1024xf32>
    %cst_47 = arith.constant 0.000000e+00 : bf16
    %50 = vector.broadcast %cst_47 : bf16 to vector<8x256xbf16>
    %c0_48 = arith.constant 0 : index
    %c0_49 = arith.constant 0 : index
    %51 = vector.load %arg11[%c0_48, %c0_49] : memref<8x1536xbf16, #tpu.memory_space<vmem>>, vector<8x256xbf16>
    tpu.vector_store %arg11[%c0_48, %c0_49], %50 {strides = array<i32>} : memref<8x1536xbf16, #tpu.memory_space<vmem>>, vector<8x256xbf16>,
    %cst_50 = arith.constant 0.000000e+00 : bf16
    %52 = vector.broadcast %cst_50 : bf16 to vector<8x256xbf16>
    %c0_51 = arith.constant 0 : index
    %c1280_52 = arith.constant 1280 : index
    %53 = vector.load %arg11[%c0_51, %c1280_52] : memref<8x1536xbf16, #tpu.memory_space<vmem>>, vector<8x256xbf16>
    tpu.vector_store %arg11[%c0_51, %c1280_52], %52 {strides = array<i32>} : memref<8x1536xbf16, #tpu.memory_space<vmem>>, vector<8x256xbf16>,
    %54 = vector.broadcast %0 : vector<1x1024xf32> to vector<8x1024xf32>
    %55 = arith.mulf %49, %54 : vector<8x1024xf32>
    %56 = arith.truncf %55 : vector<8x1024xf32> to vector<8x1024xbf16>
    %c0_53 = arith.constant 0 : index
    %c256_54 = arith.constant 256 : index
    %57 = vector.load %arg11[%c0_53, %c256_54] : memref<8x1536xbf16, #tpu.memory_space<vmem>>, vector<8x1024xbf16>
    tpu.vector_store %arg11[%c0_53, %c256_54], %56 {strides = array<i32>} : memref<8x1536xbf16, #tpu.memory_space<vmem>>, vector<8x1024xbf16>,
    %c0_55 = arith.constant 0 : index
    %c0_56 = arith.constant 0 : index
    %58 = vector.load %arg6[%c0_55, %c0_56] : memref<8x72xbf16, #tpu.memory_space<vmem>>, vector<8x72xbf16>
    %c0_57 = arith.constant 0 : index
    %c0_58 = arith.constant 0 : index
    %59 = vector.load %arg7[%c0_57, %c0_58] : memref<8x1xf32, #tpu.memory_space<vmem>>, vector<8x1xf32>
    %c0_59 = arith.constant 0 : index
    %c127_60 = arith.constant 127 : index
    %60 = vector.load %arg11[%c0_59, %c127_60] : memref<8x1536xbf16, #tpu.memory_space<vmem>>, vector<8x1024xbf16>
    %c0_61 = arith.constant 0 : index
    %c0_62 = arith.constant 0 : index
    %61 = vector.load %arg12[%c0_61, %c0_62] : memref<72x1024xbf16, #tpu.memory_space<vmem>>, vector<8x1024xbf16>
    tpu.vector_store %arg12[%c0_61, %c0_62], %60 {strides = array<i32>} : memref<72x1024xbf16, #tpu.memory_space<vmem>>, vector<8x1024xbf16>,
    %c0_63 = arith.constant 0 : index
    %c128_64 = arith.constant 128 : index
    %62 = vector.load %arg11[%c0_63, %c128_64] : memref<8x1536xbf16, #tpu.memory_space<vmem>>, vector<8x1024xbf16>
    %c8_65 = arith.constant 8 : index
    %c0_66 = arith.constant 0 : index
    %63 = vector.load %arg12[%c8_65, %c0_66] : memref<72x1024xbf16, #tpu.memory_space<vmem>>, vector<8x1024xbf16>
    tpu.vector_store %arg12[%c8_65, %c0_66], %62 {strides = array<i32>} : memref<72x1024xbf16, #tpu.memory_space<vmem>>, vector<8x1024xbf16>,
    %c0_67 = arith.constant 0 : index
    %c129_68 = arith.constant 129 : index
    %64 = vector.load %arg11[%c0_67, %c129_68] : memref<8x1536xbf16, #tpu.memory_space<vmem>>, vector<8x1024xbf16>
    %c16_69 = arith.constant 16 : index
    %c0_70 = arith.constant 0 : index
    %65 = vector.load %arg12[%c16_69, %c0_70] : memref<72x1024xbf16, #tpu.memory_space<vmem>>, vector<8x1024xbf16>
    tpu.vector_store %arg12[%c16_69, %c0_70], %64 {strides = array<i32>} : memref<72x1024xbf16, #tpu.memory_space<vmem>>, vector<8x1024xbf16>,
    %c0_71 = arith.constant 0 : index
    %c255_72 = arith.constant 255 : index
    %66 = vector.load %arg11[%c0_71, %c255_72] : memref<8x1536xbf16, #tpu.memory_space<vmem>>, vector<8x1024xbf16>
    %c24_73 = arith.constant 24 : index
    %c0_74 = arith.constant 0 : index
    %67 = vector.load %arg12[%c24_73, %c0_74] : memref<72x1024xbf16, #tpu.memory_space<vmem>>, vector<8x1024xbf16>
    tpu.vector_store %arg12[%c24_73, %c0_74], %66 {strides = array<i32>} : memref<72x1024xbf16, #tpu.memory_space<vmem>>, vector<8x1024xbf16>,
    %c0_75 = arith.constant 0 : index
    %c256_76 = arith.constant 256 : index
    %68 = vector.load %arg11[%c0_75, %c256_76] : memref<8x1536xbf16, #tpu.memory_space<vmem>>, vector<8x1024xbf16>
    %c32_77 = arith.constant 32 : index
    %c0_78 = arith.constant 0 : index
    %69 = vector.load %arg12[%c32_77, %c0_78] : memref<72x1024xbf16, #tpu.memory_space<vmem>>, vector<8x1024xbf16>
    tpu.vector_store %arg12[%c32_77, %c0_78], %68 {strides = array<i32>} : memref<72x1024xbf16, #tpu.memory_space<vmem>>, vector<8x1024xbf16>,
    %c0_79 = arith.constant 0 : index
    %c257_80 = arith.constant 257 : index
    %70 = vector.load %arg11[%c0_79, %c257_80] : memref<8x1536xbf16, #tpu.memory_space<vmem>>, vector<8x1024xbf16>
    %c40_81 = arith.constant 40 : index
    %c0_82 = arith.constant 0 : index
    %71 = vector.load %arg12[%c40_81, %c0_82] : memref<72x1024xbf16, #tpu.memory_space<vmem>>, vector<8x1024xbf16>
    tpu.vector_store %arg12[%c40_81, %c0_82], %70 {strides = array<i32>} : memref<72x1024xbf16, #tpu.memory_space<vmem>>, vector<8x1024xbf16>,
    %c0_83 = arith.constant 0 : index
    %c383_84 = arith.constant 383 : index
    %72 = vector.load %arg11[%c0_83, %c383_84] : memref<8x1536xbf16, #tpu.memory_space<vmem>>, vector<8x1024xbf16>
    %c48_85 = arith.constant 48 : index
    %c0_86 = arith.constant 0 : index
    %73 = vector.load %arg12[%c48_85, %c0_86] : memref<72x1024xbf16, #tpu.memory_space<vmem>>, vector<8x1024xbf16>
    tpu.vector_store %arg12[%c48_85, %c0_86], %72 {strides = array<i32>} : memref<72x1024xbf16, #tpu.memory_space<vmem>>, vector<8x1024xbf16>,
    %c0_87 = arith.constant 0 : index
    %c384_88 = arith.constant 384 : index
    %74 = vector.load %arg11[%c0_87, %c384_88] : memref<8x1536xbf16, #tpu.memory_space<vmem>>, vector<8x1024xbf16>
    %c56_89 = arith.constant 56 : index
    %c0_90 = arith.constant 0 : index
    %75 = vector.load %arg12[%c56_89, %c0_90] : memref<72x1024xbf16, #tpu.memory_space<vmem>>, vector<8x1024xbf16>
    tpu.vector_store %arg12[%c56_89, %c0_90], %74 {strides = array<i32>} : memref<72x1024xbf16, #tpu.memory_space<vmem>>, vector<8x1024xbf16>,
    %c0_91 = arith.constant 0 : index
    %c385_92 = arith.constant 385 : index
    %76 = vector.load %arg11[%c0_91, %c385_92] : memref<8x1536xbf16, #tpu.memory_space<vmem>>, vector<8x1024xbf16>
    %c64_93 = arith.constant 64 : index
    %c0_94 = arith.constant 0 : index
    %77 = vector.load %arg12[%c64_93, %c0_94] : memref<72x1024xbf16, #tpu.memory_space<vmem>>, vector<8x1024xbf16>
    tpu.vector_store %arg12[%c64_93, %c0_94], %76 {strides = array<i32>} : memref<72x1024xbf16, #tpu.memory_space<vmem>>, vector<8x1024xbf16>,
    %c0_95 = arith.constant 0 : index
    %c0_96 = arith.constant 0 : index
    %78 = vector.load %arg12[%c0_95, %c0_96] : memref<72x1024xbf16, #tpu.memory_space<vmem>>, vector<72x1024xbf16>
    %cst_97 = arith.constant dense<0.000000e+00> : vector<8x1024xf32>
    %79 = tpu.matmul %58, %78, %cst_97 {dimension_numbers = #tpu.dot_dimension_numbers<[1], [0], [0], [1], [0, 0, 1, 1], [], []>} : vector<8x72xbf16>, vector<72x1024xbf16>, vector<8x1024xf32> -> vector<8x1024xf32>
    %80 = vector.broadcast %59 : vector<8x1xf32> to vector<8x1024xf32>
    %81 = arith.addf %79, %80 : vector<8x1024xf32>
    %cst_98 = arith.constant 0.000000e+00 : f32
    %cst_99 = arith.constant 2.000000e+01 : f32
    %82 = vector.broadcast %cst_98 : f32 to vector<8x1024xf32>
    %83 = arith.maximumf %82, %81 : vector<8x1024xf32>
    %84 = vector.broadcast %cst_99 : f32 to vector<8x1024xf32>
    %85 = arith.minimumf %84, %83 : vector<8x1024xf32>
    %c0_100 = arith.constant 0 : index
    %c0_101 = arith.constant 0 : index
    %c0_102 = arith.constant 0 : index
    %86 = vector.load %arg9[%c0_100, %c0_101, %c0_102] : memref<1x8x1024xf32, #tpu.memory_space<vmem>>, vector<1x8x1024xf32>
    %87 = vector.shape_cast %86 : vector<1x8x1024xf32> to vector<8x1024xf32>
    %88 = vector.shape_cast %85 : vector<8x1024xf32> to vector<1x8x1024xf32>
    tpu.vector_store %arg9[%c0_100, %c0_101, %c0_102], %88 {strides = array<i32>} : memref<1x8x1024xf32, #tpu.memory_space<vmem>>, vector<1x8x1024xf32>,
    return
  }
  func.func @transform_0(%arg0: i32) -> (i32, i32, i32) {
    %c0_i32 = arith.constant 0 : i32
    %c0_i32_0 = arith.constant 0 : i32
    %c0_i32_1 = arith.constant 0 : i32
    return %arg0, %c0_i32, %c0_i32_0 : i32, i32, i32
  }
  func.func @transform_1(%arg0: i32) -> (i32, i32) {
    %c0_i32 = arith.constant 0 : i32
    %c0_i32_0 = arith.constant 0 : i32
    %c0_i32_1 = arith.constant 0 : i32
    return %c0_i32, %c0_i32_0 : i32, i32
  }
  func.func @transform_2(%arg0: i32) -> (i32, i32) {
    %c0_i32 = arith.constant 0 : i32
    %c0_i32_0 = arith.constant 0 : i32
    %c0_i32_1 = arith.constant 0 : i32
    return %c0_i32, %c0_i32_0 : i32, i32
  }
  func.func @transform_3(%arg0: i32) -> (i32, i32, i32) {
    %c0_i32 = arith.constant 0 : i32
    %c0_i32_0 = arith.constant 0 : i32
    %c0_i32_1 = arith.constant 0 : i32
    %c0_i32_2 = arith.constant 0 : i32
    return %c0_i32, %c0_i32_0, %c0_i32_1 : i32, i32, i32
  }
  func.func @transform_4(%arg0: i32) -> (i32, i32, i32) {
    %c0_i32 = arith.constant 0 : i32
    %c0_i32_0 = arith.constant 0 : i32
    %c0_i32_1 = arith.constant 0 : i32
    %c0_i32_2 = arith.constant 0 : i32
    return %c0_i32, %c0_i32_0, %c0_i32_1 : i32, i32, i32
  }
  func.func @transform_5(%arg0: i32) -> (i32, i32) {
    %c0_i32 = arith.constant 0 : i32
    %c0_i32_0 = arith.constant 0 : i32
    %c0_i32_1 = arith.constant 0 : i32
    return %c0_i32, %c0_i32_0 : i32, i32
  }
  func.func @transform_6(%arg0: i32) -> (i32, i32) {
    %c0_i32 = arith.constant 0 : i32
    %c0_i32_0 = arith.constant 0 : i32
    %c0_i32_1 = arith.constant 0 : i32
    return %c0_i32, %c0_i32_0 : i32, i32
  }
  func.func @transform_7(%arg0: i32) -> (i32, i32) {
    %c0_i32 = arith.constant 0 : i32
    %c0_i32_0 = arith.constant 0 : i32
    %c0_i32_1 = arith.constant 0 : i32
    return %c0_i32, %c0_i32_0 : i32, i32
  }
  func.func @transform_8(%arg0: i32) -> (i32, i32, i32) {
    %c0_i32 = arith.constant 0 : i32
    %c0_i32_0 = arith.constant 0 : i32
    %c0_i32_1 = arith.constant 0 : i32
    return %arg0, %c0_i32, %c0_i32_0 : i32, i32, i32
  }
}

</mosaic_0001>

<llo_original>
// kernel: encoder_forward.1
$region0: #{encoder_forward.1}
  #allocation0 [shape = 'u32[]', space=smem, size = 0x4, offset = 0x4, fixed_abs, tag = 'smem constant byte address 0x4 - core index']
  #allocation1 [shape = 'u32[72,128]{1,0:T(1,128)}', space=vmem, size = 0x9000, scoped, tag = 'internal scratch']
  #allocation2 [shape = 'bf16[8,1536]{1,0:T(8,128)(2,1)}', space=vmem, size = 0x6000, scoped, tag = 'scratch operand']
  #allocation3 [shape = 'bf16[8,1536]{1,0:T(8,128)(2,1)}', space=vmem, size = 0x6000, scoped, tag = 'scratch operand']
  #allocation4 [shape = 'bf16[72,1024]{1,0:T(8,128)(2,1)}', space=vmem, size = 0x24000, scoped, tag = 'scratch operand']
  %s0 = inlined_call_operand.vmem [shape: bf16[2,16,1024], index: 0, kind: input, shape index: {}]
  %s1 = inlined_call_operand.vmem [shape: bf16[8,16], index: 1, kind: input, shape index: {}]
  %s2 = inlined_call_operand.vmem [shape: f32[8,1], index: 2, kind: input, shape index: {}]
  %s3 = inlined_call_operand.vmem [shape: bf16[1,8,72], index: 3, kind: input, shape index: {}]
  %s4 = inlined_call_operand.vmem [shape: f32[1,8,1], index: 4, kind: input, shape index: {}]
  %s5 = inlined_call_operand.vmem [shape: bf16[8,72], index: 5, kind: input, shape index: {}]
  %s6 = inlined_call_operand.vmem [shape: f32[8,1], index: 6, kind: input, shape index: {}]
  %s7 = inlined_call_operand.vmem [shape: f32[1,1024], index: 7, kind: input, shape index: {}]
  %s8 = inlined_call_operand.vmem [shape: f32[2,8,1024], index: 8, kind: output, shape index: {}]
  %s9 = sld [smem:[#allocation0]]
  $region65: #{encoder_forward.1} parent=0
    _
  %s11 = ssub.s32 1, %s9
  %s12 = scalar_select 0, %s11, %s9
  loop: start=0, step=1, limit=4
  $region2: #{encoder_forward.1} parent=0 // loop_pre_header
    _
  $region3: #{encoder_forward.1} parent=0 // loop_header
    %s14 = sphi 0, %s18
    %p15 = scmp.ge.s32.totalorder %s14, 4
    %s24 = sphi 0, %s26
    %s27 = sphi 0, %s24
    %s28 = sphi 0, %s27
    %s44 = sphi 0, %s28
    %s48 = sphi 0, %s48
    %s50 = sphi 0, %s48
    %s51 = sphi 0, %s50
    %s65 = sphi 0, %s51
    %s69 = sphi 0, %s69
    %s71 = sphi 0, %s69
    %s72 = sphi 0, %s71
    %s86 = sphi 0, %s72
    %s90 = sphi 0, %s90
    %s92 = sphi 0, %s90
    %s93 = sphi 0, %s92
    %s107 = sphi 0, %s93
    %s111 = sphi 0, %s111
    %s113 = sphi 0, %s111
    %s114 = sphi 0, %s113
    %s128 = sphi 0, %s114
    %s132 = sphi 0, %s132
    %s134 = sphi 0, %s132
    %s135 = sphi 0, %s134
    %s149 = sphi 0, %s135
    %s153 = sphi 0, %s153
    %s155 = sphi 0, %s153
    %s156 = sphi 0, %s155
    %s170 = sphi 0, %s156
    %s174 = sphi 0, %s174
    %s176 = sphi 0, %s174
    %s177 = sphi 0, %s176
    %s191 = sphi 0, %s177
    %s197 = sphi 0, %s199
    %s200 = sphi 0, %s197
    %s201 = sphi 0, %s200
    %s217 = sphi 0, %s201
  $region4: #{encoder_forward.1} parent=0 // loop_header_branch
    %17 = sbr.rel (%p15) target = $region8
  $region5: #{encoder_forward.1} parent=0 // loop_body
    %s19 = ssub.s32 %s14, 1
    %s20 = ssub.s32 %s14, 2
    %s21 = sadd.s32 %s14, 1
    %s22 = ssub.s32 %s14, %s21
    %p23 = scmp.eq.s32.totalorder %s22, 0
    %s25 = sadd.s32 %s24, 1
    %s26 = scalar_select %p23, %s24, %s25
    %p29 = pneg %p23
    %p30 = scmp.eq.s32.totalorder %s14, 1
    %p31 = por %p29, %p30
    %p32 = scmp.ne.s32.totalorder %s24, %s27
    %p33 = scmp.eq.s32.totalorder %s14, 0
    %p34 = por %p32, %p33
    %p35 = scmp.ne.s32.totalorder %s24, %s27
    %p36 = scmp.eq.s32.totalorder %s19, 1
    %p37 = por %p35, %p36
    %p38 = scmp.ne.s32.totalorder %s27, %s28
    %p39 = scmp.eq.s32.totalorder %s19, 0
    %p40 = por %p38, %p39
    %p41 = scmp.ne.s32.totalorder %s27, %s28
    %p42 = scmp.eq.s32.totalorder %s20, 1
    %p43 = por %p41, %p42
    %p45 = scmp.ne.s32.totalorder %s28, %s44
    %p46 = scmp.eq.s32.totalorder %s20, 0
    %p47 = por %p45, %p46
    %s49 = sadd.s32 %s48, 1
    %p52 = scmp.eq.s32.totalorder %s14, 1
    %p53 = scmp.ne.s32.totalorder %s48, %s50
    %p54 = scmp.eq.s32.totalorder %s14, 0
    %p55 = por %p53, %p54
    %p56 = scmp.ne.s32.totalorder %s48, %s50
    %p57 = scmp.eq.s32.totalorder %s19, 1
    %p58 = por %p56, %p57
    %p59 = scmp.ne.s32.totalorder %s50, %s51
    %p60 = scmp.eq.s32.totalorder %s19, 0
    %p61 = por %p59, %p60
    %p62 = scmp.ne.s32.totalorder %s50, %s51
    %p63 = scmp.eq.s32.totalorder %s20, 1
    %p64 = por %p62, %p63
    %p66 = scmp.ne.s32.totalorder %s51, %s65
    %p67 = scmp.eq.s32.totalorder %s20, 0
    %p68 = por %p66, %p67
    %s70 = sadd.s32 %s69, 1
    %p73 = scmp.eq.s32.totalorder %s14, 1
    %p74 = scmp.ne.s32.totalorder %s69, %s71
    %p75 = scmp.eq.s32.totalorder %s14, 0
    %p76 = por %p74, %p75
    %p77 = scmp.ne.s32.totalorder %s69, %s71
    %p78 = scmp.eq.s32.totalorder %s19, 1
    %p79 = por %p77, %p78
    %p80 = scmp.ne.s32.totalorder %s71, %s72
    %p81 = scmp.eq.s32.totalorder %s19, 0
    %p82 = por %p80, %p81
    %p83 = scmp.ne.s32.totalorder %s71, %s72
    %p84 = scmp.eq.s32.totalorder %s20, 1
    %p85 = por %p83, %p84
    %p87 = scmp.ne.s32.totalorder %s72, %s86
    %p88 = scmp.eq.s32.totalorder %s20, 0
    %p89 = por %p87, %p88
    %s91 = sadd.s32 %s90, 1
    %p94 = scmp.eq.s32.totalorder %s14, 1
    %p95 = scmp.ne.s32.totalorder %s90, %s92
    %p96 = scmp.eq.s32.totalorder %s14, 0
    %p97 = por %p95, %p96
    %p98 = scmp.ne.s32.totalorder %s90, %s92
    %p99 = scmp.eq.s32.totalorder %s19, 1
    %p100 = por %p98, %p99
    %p101 = scmp.ne.s32.totalorder %s92, %s93
    %p102 = scmp.eq.s32.totalorder %s19, 0
    %p103 = por %p101, %p102
    %p104 = scmp.ne.s32.totalorder %s92, %s93
    %p105 = scmp.eq.s32.totalorder %s20, 1
    %p106 = por %p104, %p105
    %p108 = scmp.ne.s32.totalorder %s93, %s107
    %p109 = scmp.eq.s32.totalorder %s20, 0
    %p110 = por %p108, %p109
    %s112 = sadd.s32 %s111, 1
    %p115 = scmp.eq.s32.totalorder %s14, 1
    %p116 = scmp.ne.s32.totalorder %s111, %s113
    %p117 = scmp.eq.s32.totalorder %s14, 0
    %p118 = por %p116, %p117
    %p119 = scmp.ne.s32.totalorder %s111, %s113
    %p120 = scmp.eq.s32.totalorder %s19, 1
    %p121 = por %p119, %p120
    %p122 = scmp.ne.s32.totalorder %s113, %s114
    %p123 = scmp.eq.s32.totalorder %s19, 0
    %p124 = por %p122, %p123
    %p125 = scmp.ne.s32.totalorder %s113, %s114
    %p126 = scmp.eq.s32.totalorder %s20, 1
    %p127 = por %p125, %p126
    %p129 = scmp.ne.s32.totalorder %s114, %s128
    %p130 = scmp.eq.s32.totalorder %s20, 0
    %p131 = por %p129, %p130
    %s133 = sadd.s32 %s132, 1
    %p136 = scmp.eq.s32.totalorder %s14, 1
    %p137 = scmp.ne.s32.totalorder %s132, %s134
    %p138 = scmp.eq.s32.totalorder %s14, 0
    %p139 = por %p137, %p138
    %p140 = scmp.ne.s32.totalorder %s132, %s134
    %p141 = scmp.eq.s32.totalorder %s19, 1
    %p142 = por %p140, %p141
    %p143 = scmp.ne.s32.totalorder %s134, %s135
    %p144 = scmp.eq.s32.totalorder %s19, 0
    %p145 = por %p143, %p144
    %p146 = scmp.ne.s32.totalorder %s134, %s135
    %p147 = scmp.eq.s32.totalorder %s20, 1
    %p148 = por %p146, %p147
    %p150 = scmp.ne.s32.totalorder %s135, %s149
    %p151 = scmp.eq.s32.totalorder %s20, 0
    %p152 = por %p150, %p151
    %s154 = sadd.s32 %s153, 1
    %p157 = scmp.eq.s32.totalorder %s14, 1
    %p158 = scmp.ne.s32.totalorder %s153, %s155
    %p159 = scmp.eq.s32.totalorder %s14, 0
    %p160 = por %p158, %p159
    %p161 = scmp.ne.s32.totalorder %s153, %s155
    %p162 = scmp.eq.s32.totalorder %s19, 1
    %p163 = por %p161, %p162
    %p164 = scmp.ne.s32.totalorder %s155, %s156
    %p165 = scmp.eq.s32.totalorder %s19, 0
    %p166 = por %p164, %p165
    %p167 = scmp.ne.s32.totalorder %s155, %s156
    %p168 = scmp.eq.s32.totalorder %s20, 1
    %p169 = por %p167, %p168
    %p171 = scmp.ne.s32.totalorder %s156, %s170
    %p172 = scmp.eq.s32.totalorder %s20, 0
    %p173 = por %p171, %p172
    %s175 = sadd.s32 %s174, 1
    %p178 = scmp.eq.s32.totalorder %s14, 1
    %p179 = scmp.ne.s32.totalorder %s174, %s176
    %p180 = scmp.eq.s32.totalorder %s14, 0
    %p181 = por %p179, %p180
    %p182 = scmp.ne.s32.totalorder %s174, %s176
    %p183 = scmp.eq.s32.totalorder %s19, 1
    %p184 = por %p182, %p183
    %p185 = scmp.ne.s32.totalorder %s176, %s177
    %p186 = scmp.eq.s32.totalorder %s19, 0
    %p187 = por %p185, %p186
    %p188 = scmp.ne.s32.totalorder %s176, %s177
    %p189 = scmp.eq.s32.totalorder %s20, 1
    %p190 = por %p188, %p189
    %p192 = scmp.ne.s32.totalorder %s177, %s191
    %p193 = scmp.eq.s32.totalorder %s20, 0
    %p194 = por %p192, %p193
    %s195 = ssub.s32 %s14, %s21
    %p196 = scmp.eq.s32.totalorder %s195, 0
    %s198 = sadd.s32 %s197, 1
    %s199 = scalar_select %p196, %s197, %s198
    %p202 = pneg %p196
    %p203 = scmp.eq.s32.totalorder %s14, 1
    %p204 = por %p202, %p203
    %p205 = scmp.ne.s32.totalorder %s197, %s200
    %p206 = scmp.eq.s32.totalorder %s14, 0
    %p207 = por %p205, %p206
    %p208 = scmp.ne.s32.totalorder %s197, %s200
    %p209 = scmp.eq.s32.totalorder %s19, 1
    %p210 = por %p208, %p209
    %p211 = scmp.ne.s32.totalorder %s200, %s201
    %p212 = scmp.eq.s32.totalorder %s19, 0
    %p213 = por %p211, %p212
    %p214 = scmp.ne.s32.totalorder %s200, %s201
    %p215 = scmp.eq.s32.totalorder %s20, 1
    %p216 = por %p214, %p215
    %p218 = scmp.ne.s32.totalorder %s201, %s217
    %p219 = scmp.eq.s32.totalorder %s20, 0
    %p220 = por %p218, %p219
    %p221 = scmp.le.s32.totalorder 1, %s14
    %p222 = scmp.lt.s32.totalorder %s14, 3
    %p223 = pnand %p221, %p222
    %p224 = pneg %p223
    // Predicated region
    $region9: #{encoder_forward.1} parent=5 // pred_check
      _
    $region10: #{encoder_forward.1} parent=5 // pred_check_branch
      %226 = sbr.rel (%p223) target = $region12
    $region11: #{encoder_forward.1} parent=5 // pred_region
      %s227 = ssub.s32 %s14, 1
      // Predicated region
      $region13: #{encoder_forward.1} parent=11 // pred_check
        %p228 = pneg %p61
      $region14: #{encoder_forward.1} parent=11 // pred_check_branch
        %230 = sbr.rel (%p228) target = $region16
      $region15: #{encoder_forward.1} parent=11 // pred_region
        _
      $region16: #{encoder_forward.1} parent=11 // pred_fallthru
        _
      // Predicated region
      $region17: #{encoder_forward.1} parent=11 // pred_check
        %p231 = pneg %p82
      $region18: #{encoder_forward.1} parent=11 // pred_check_branch
        %233 = sbr.rel (%p231) target = $region20
      $region19: #{encoder_forward.1} parent=11 // pred_region
        _
      $region20: #{encoder_forward.1} parent=11 // pred_fallthru
        _
      // Predicated region
      $region21: #{encoder_forward.1} parent=11 // pred_check
        %p234 = pneg %p103
      $region22: #{encoder_forward.1} parent=11 // pred_check_branch
        %236 = sbr.rel (%p234) target = $region24
      $region23: #{encoder_forward.1} parent=11 // pred_region
        _
      $region24: #{encoder_forward.1} parent=11 // pred_fallthru
        _
      // Predicated region
      $region25: #{encoder_forward.1} parent=11 // pred_check
        %p237 = pneg %p124
      $region26: #{encoder_forward.1} parent=11 // pred_check_branch
        %239 = sbr.rel (%p237) target = $region28
      $region27: #{encoder_forward.1} parent=11 // pred_region
        _
      $region28: #{encoder_forward.1} parent=11 // pred_fallthru
        _
      // Predicated region
      $region29: #{encoder_forward.1} parent=11 // pred_check
        %p240 = pneg %p145
      $region30: #{encoder_forward.1} parent=11 // pred_check_branch
        %242 = sbr.rel (%p240) target = $region32
      $region31: #{encoder_forward.1} parent=11 // pred_region
        _
      $region32: #{encoder_forward.1} parent=11 // pred_fallthru
        _
      // Predicated region
      $region33: #{encoder_forward.1} parent=11 // pred_check
        %p243 = pneg %p166
      $region34: #{encoder_forward.1} parent=11 // pred_check_branch
        %245 = sbr.rel (%p243) target = $region36
      $region35: #{encoder_forward.1} parent=11 // pred_region
        _
      $region36: #{encoder_forward.1} parent=11 // pred_fallthru
        _
      // Predicated region
      $region37: #{encoder_forward.1} parent=11 // pred_check
        %p246 = pneg %p187
      $region38: #{encoder_forward.1} parent=11 // pred_check_branch
        %248 = sbr.rel (%p246) target = $region40
      $region39: #{encoder_forward.1} parent=11 // pred_region
        _
      $region40: #{encoder_forward.1} parent=11 // pred_fallthru
        _
    $region12: #{encoder_forward.1} parent=5 // pred_fallthru
      _
    %p249 = scmp.lt.s32.totalorder %s14, 2
    // Predicated region
    $region41: #{encoder_forward.1} parent=5 // pred_check
      %p250 = pneg %p249
    $region42: #{encoder_forward.1} parent=5 // pred_check_branch
      %252 = sbr.rel (%p250) target = $region44
    $region43: #{encoder_forward.1} parent=5 // pred_region
      // Predicated region
      $region45: #{encoder_forward.1} parent=43 // pred_check
        %p253 = pneg %p34
      $region46: #{encoder_forward.1} parent=43 // pred_check_branch
        %255 = sbr.rel (%p253) target = $region48
      $region47: #{encoder_forward.1} parent=43 // pred_region
        %p256 = scmp.lt.s32.totalorder %s14, 1
        %s257 = scalar_select %p256, %s14, 1
        %s258 = smul.addr %s257, 16
        %s259 = smul.addr %s258, 4
        %s260 = scalar_lea.vmem %s0, %s259
      $region48: #{encoder_forward.1} parent=43 // pred_fallthru
        _
    $region44: #{encoder_forward.1} parent=5 // pred_fallthru
      _
    %p261 = scmp.le.s32.totalorder 1, %s14
    %p262 = scmp.lt.s32.totalorder %s14, 3
    %p263 = pnand %p261, %p262
    %p264 = pneg %p263
    // Predicated region
    $region49: #{encoder_forward.1} parent=5 // pred_check
      _
    $region50: #{encoder_forward.1} parent=5 // pred_check_branch
      %266 = sbr.rel (%p263) target = $region52
    $region51: #{encoder_forward.1} parent=5 // pred_region
      %s267 = ssub.s32 %s14, 1
      %p268 = scmp.lt.s32.totalorder %s19, 1
      %s269 = scalar_select %p268, %s19, 1
      %s270 = smul.addr %s269, 16
      %s271 = smul.addr %s270, 4
      %s272 = scalar_lea.vmem %s0, %s271
      %p273 = pneg %p40
      %p274 = pneg %p37
      %p275 = pneg %p61
      %p276 = pneg %p58
      %p277 = pneg %p82
      %p278 = pneg %p79
      %p279 = pneg %p103
      %p280 = pneg %p100
      %p281 = pneg %p124
      %p282 = pneg %p121
      %p283 = pneg %p145
      %p284 = pneg %p142
      %p285 = pneg %p166
      %p286 = pneg %p163
      %p287 = pneg %p187
      %p288 = pneg %p184
      %p289 = pneg %p213
      %p290 = pneg %p210
      %p291 = scmp.lt.s32.totalorder %s19, 1
      %s292 = scalar_select %p291, %s19, 1
      %s293 = smul.addr %s292, 8
      %s294 = smul.addr %s293, 8
      %s295 = scalar_lea.vmem %s8, %s294
      %p296 = scmp.lt.s32.totalorder %s19, 1
      %s297 = scalar_select %p296, %s19, 1
      %s298 = smul.addr %s297, 16
      %s299 = smul.addr %s298, 4
      %s300 = scalar_lea.vmem %s0, %s299
      %p301 = scmp.lt.s32.totalorder %s19, 1
      %s302 = scalar_select %p301, %s19, 1
      %s303 = smul.addr %s302, 8
      %s304 = smul.addr %s303, 8
      %s305 = scalar_lea.vmem %s8, %s304
      %v307 = vld [vmem:[%s7] sm:$0xff]
      %v308 = vld [vmem:[%s1] sm:$0xf]
      %v309 = vld [vmem:[%s300] sm:$0xff]
      %v310 = vld [vmem:[%s300 + $0x8] sm:$0xff]
      %v311 = vld [vmem:[%s300 + $0x10] sm:$0xff]
      %v312 = vld [vmem:[%s300 + $0x18] sm:$0xff]
      %v313 = vld [vmem:[%s300 + $0x20] sm:$0xff]
      %v314 = vld [vmem:[%s300 + $0x28] sm:$0xff]
      %v315 = vld [vmem:[%s300 + $0x30] sm:$0xff]
      %v316 = vld [vmem:[%s300 + $0x38] sm:$0xff]
      %v317 = vld [vmem:[%s2] sm:$0xff]
      %319 = vset.pattern.permute.xlu0 0
      %320 = vperm.xlu0 %319, %v317
      %v321 = vpop.permute.xlu0 %320
      %v331 = vunpack.c.l.b16 %v309
      %v332 = vunpack.c.h.b16 %v309
      %v333 = vunpack.c.l.b16 %v310
      %v334 = vunpack.c.h.b16 %v310
      %v335 = vunpack.c.l.b16 %v311
      %v336 = vunpack.c.h.b16 %v311
      %v337 = vunpack.c.l.b16 %v312
      %v338 = vunpack.c.h.b16 %v312
      %v339 = vunpack.c.l.b16 %v313
      %v340 = vunpack.c.h.b16 %v313
      %v341 = vunpack.c.l.b16 %v314
      %v342 = vunpack.c.h.b16 %v314
      %v343 = vunpack.c.l.b16 %v315
      %v344 = vunpack.c.h.b16 %v315
      %v345 = vunpack.c.l.b16 %v316
      %v346 = vunpack.c.h.b16 %v316
      %v347 = vpack.c.b16 %v339, %v331
      %v348 = vpack.c.b16 %v340, %v332
      %v349 = vpack.c.b16 %v341, %v333
      %v350 = vpack.c.b16 %v342, %v334
      %v351 = vpack.c.b16 %v343, %v335
      %v352 = vpack.c.b16 %v344, %v336
      %v353 = vpack.c.b16 %v345, %v337
      %v354 = vpack.c.b16 %v346, %v338
      %vm363 = vcmask 130048
      %v365 = vsel %vm363, %v308, 0
      %367 = vmatpush.bf16.msra.mxu0 0
      %368 = vmatpush.bf16.msra.mxu0 0
      %369 = vmatpush.bf16.msra.mxu0 0
      %370 = vmatpush.bf16.msra.mxu0 0
      %371 = vmatpush.bf16.msra.mxu0 0
      %372 = vmatpush.bf16.msra.mxu0 0
      %373 = vmatpush.bf16.msra.mxu0 0
      %374 = vmatpush.bf16.msra.mxu0 %v347
      %375 = vmatmul.bf16.gmra.mxu0 %v365
      %v376 = vpop.f32.mrf.mxu0
      %v377 = vadd.f32 %v321, %v376
      %v378 = vpop.f32.mrf.mxu0
      %379 = vdwg.mxu0
      %380 = vmatpush.bf16.msra.mxu0 0
      %381 = vmatpush.bf16.msra.mxu0 0
      %382 = vmatpush.bf16.msra.mxu0 0
      %383 = vmatpush.bf16.msra.mxu0 0
      %384 = vmatpush.bf16.msra.mxu0 0
      %385 = vmatpush.bf16.msra.mxu0 0
      %386 = vmatpush.bf16.msra.mxu0 0
      %387 = vmatpush.bf16.msra.mxu0 %v348
      %388 = vmatmul.bf16.gmra.mxu0 %v365
      %v389 = vpop.f32.mrf.mxu0
      %v390 = vadd.f32 %v321, %v389
      %v391 = vpop.f32.mrf.mxu0
      %392 = vdwg.mxu0
      %393 = vmatpush.bf16.msra.mxu0 0
      %394 = vmatpush.bf16.msra.mxu0 0
      %395 = vmatpush.bf16.msra.mxu0 0
      %396 = vmatpush.bf16.msra.mxu0 0
      %397 = vmatpush.bf16.msra.mxu0 0
      %398 = vmatpush.bf16.msra.mxu0 0
      %399 = vmatpush.bf16.msra.mxu0 0
      %400 = vmatpush.bf16.msra.mxu0 %v349
      %401 = vmatmul.bf16.gmra.mxu0 %v365
      %v402 = vpop.f32.mrf.mxu0
      %v403 = vadd.f32 %v321, %v402
      %v404 = vpop.f32.mrf.mxu0
      %405 = vdwg.mxu0
      %406 = vmatpush.bf16.msra.mxu0 0
      %407 = vmatpush.bf16.msra.mxu0 0
      %408 = vmatpush.bf16.msra.mxu0 0
      %409 = vmatpush.bf16.msra.mxu0 0
      %410 = vmatpush.bf16.msra.mxu0 0
      %411 = vmatpush.bf16.msra.mxu0 0
      %412 = vmatpush.bf16.msra.mxu0 0
      %413 = vmatpush.bf16.msra.mxu0 %v350
      %414 = vmatmul.bf16.gmra.mxu0 %v365
      %v415 = vpop.f32.mrf.mxu0
      %v416 = vadd.f32 %v321, %v415
      %v417 = vpop.f32.mrf.mxu0
      %418 = vdwg.mxu0
      %419 = vmatpush.bf16.msra.mxu0 0
      %420 = vmatpush.bf16.msra.mxu0 0
      %421 = vmatpush.bf16.msra.mxu0 0
      %422 = vmatpush.bf16.msra.mxu0 0
      %423 = vmatpush.bf16.msra.mxu0 0
      %424 = vmatpush.bf16.msra.mxu0 0
      %425 = vmatpush.bf16.msra.mxu0 0
      %426 = vmatpush.bf16.msra.mxu0 %v351
      %427 = vmatmul.bf16.gmra.mxu0 %v365
      %v428 = vpop.f32.mrf.mxu0
      %v429 = vadd.f32 %v321, %v428
      %v430 = vpop.f32.mrf.mxu0
      %431 = vdwg.mxu0
      %432 = vmatpush.bf16.msra.mxu0 0
      %433 = vmatpush.bf16.msra.mxu0 0
      %434 = vmatpush.bf16.msra.mxu0 0
      %435 = vmatpush.bf16.msra.mxu0 0
      %436 = vmatpush.bf16.msra.mxu0 0
      %437 = vmatpush.bf16.msra.mxu0 0
      %438 = vmatpush.bf16.msra.mxu0 0
      %439 = vmatpush.bf16.msra.mxu0 %v352
      %440 = vmatmul.bf16.gmra.mxu0 %v365
      %v441 = vpop.f32.mrf.mxu0
      %v442 = vadd.f32 %v321, %v441
      %v443 = vpop.f32.mrf.mxu0
      %444 = vdwg.mxu0
      %445 = vmatpush.bf16.msra.mxu0 0
      %446 = vmatpush.bf16.msra.mxu0 0
      %447 = vmatpush.bf16.msra.mxu0 0
      %448 = vmatpush.bf16.msra.mxu0 0
      %449 = vmatpush.bf16.msra.mxu0 0
      %450 = vmatpush.bf16.msra.mxu0 0
      %451 = vmatpush.bf16.msra.mxu0 0
      %452 = vmatpush.bf16.msra.mxu0 %v353
      %453 = vmatmul.bf16.gmra.mxu0 %v365
      %v454 = vpop.f32.mrf.mxu0
      %v455 = vadd.f32 %v321, %v454
      %v456 = vpop.f32.mrf.mxu0
      %457 = vdwg.mxu0
      %458 = vmatpush.bf16.msra.mxu0 0
      %459 = vmatpush.bf16.msra.mxu0 0
      %460 = vmatpush.bf16.msra.mxu0 0
      %461 = vmatpush.bf16.msra.mxu0 0
      %462 = vmatpush.bf16.msra.mxu0 0
      %463 = vmatpush.bf16.msra.mxu0 0
      %464 = vmatpush.bf16.msra.mxu0 0
      %465 = vmatpush.bf16.msra.mxu0 %v354
      %466 = vmatmul.bf16.gmra.mxu0 %v365
      %v467 = vpop.f32.mrf.mxu0
      %v468 = vadd.f32 %v321, %v467
      %v469 = vpop.f32.mrf.mxu0
      %470 = vdwg.mxu0
      %v471 = vmax.f32 %v377, 0.0
      %v472 = vmax.f32 %v390, 0.0
      %v473 = vmax.f32 %v403, 0.0
      %v474 = vmax.f32 %v416, 0.0
      %v475 = vmax.f32 %v429, 0.0
      %v476 = vmax.f32 %v442, 0.0
      %v477 = vmax.f32 %v455, 0.0
      %v478 = vmax.f32 %v468, 0.0
      %v479 = vmin.f32 %v471, 20.0
      %v480 = vmin.f32 %v472, 20.0
      %v481 = vmin.f32 %v473, 20.0
      %v482 = vmin.f32 %v474, 20.0
      %v483 = vmin.f32 %v475, 20.0
      %v484 = vmin.f32 %v476, 20.0
      %v485 = vmin.f32 %v477, 20.0
      %v486 = vmin.f32 %v478, 20.0
      %487 = vst [vmem:[#allocation2] sm:$0xff] 0
      %488 = vst [vmem:[#allocation2 + $0x28] sm:$0xff] 0
      %v490 = vperm.slane %v307, 0
      %v491 = vperm.slane %v307, 1
      %v492 = vperm.slane %v307, 2
      %v493 = vperm.slane %v307, 3
      %v494 = vperm.slane %v307, 4
      %v495 = vperm.slane %v307, 5
      %v496 = vperm.slane %v307, 6
      %v497 = vperm.slane %v307, 7
      %v506 = vmul.f32 %v479, %v490
      %v507 = vmul.f32 %v480, %v491
      %v508 = vmul.f32 %v481, %v492
      %v509 = vmul.f32 %v482, %v493
      %v510 = vmul.f32 %v483, %v494
      %v511 = vmul.f32 %v484, %v495
      %v512 = vmul.f32 %v485, %v496
      %v513 = vmul.f32 %v486, %v497
      %v514 = vpack.c.bf16 %v507, %v506
      %v515 = vpack.c.bf16 %v509, %v508
      %v516 = vpack.c.bf16 %v511, %v510
      %v517 = vpack.c.bf16 %v513, %v512
      %518 = vst [vmem:[#allocation2 + $0x8] sm:$0xff] %v514
      %519 = vst [vmem:[#allocation2 + $0x10] sm:$0xff] %v515
      %520 = vst [vmem:[#allocation2 + $0x18] sm:$0xff] %v516
      %521 = vst [vmem:[#allocation2 + $0x20] sm:$0xff] %v517
      %v522 = vld [vmem:[%s3] sm:$0xf]
      %v523 = vld [vmem:[%s4] sm:$0xff]
      %v524 = vld [vmem:[#allocation2] sm:$0xff]
      %v525 = vld [vmem:[#allocation2 + $0x8] sm:$0xff]
      %v526 = vld [vmem:[#allocation2 + $0x10] sm:$0xff]
      %v527 = vld [vmem:[#allocation2 + $0x18] sm:$0xff]
      %v528 = vld [vmem:[#allocation2 + $0x20] sm:$0xf]
      %534 = vrot.lane.b32.xlu0 %v524, 1
      %v535 = vpop.permute.xlu0 %534
      %536 = vrot.lane.b32.xlu0 %v525, 1
      %v537 = vpop.permute.xlu0 %536
      %538 = vrot.lane.b32.xlu0 %v526, 1
      %v539 = vpop.permute.xlu0 %538
      %540 = vrot.lane.b32.xlu0 %v527, 1
      %v541 = vpop.permute.xlu0 %540
      %542 = vrot.lane.b32.xlu0 %v528, 1
      %v543 = vpop.permute.xlu0 %542
      %v544 = vrot.slane %v535, 4
      %v545 = vrot.slane %v537, 4
      %v546 = vrot.slane %v539, 4
      %v547 = vrot.slane %v541, 4
      %v548 = vrot.slane %v543, 4
      %vm549 = vcmask 1043456
      %v550 = vsel %vm549, %v544, %v545
      %vm551 = vcmask 7168
      %v552 = vsel %vm551, %v535, %v550
      %v553 = vsel %vm549, %v545, %v546
      %v554 = vsel %vm551, %v537, %v553
      %v555 = vsel %vm549, %v546, %v547
      %v556 = vsel %vm551, %v539, %v555
      %v557 = vsel %vm549, %v547, %v548
      %v558 = vsel %vm551, %v541, %v557
      %563 = vst [vmem:[#allocation4] sm:$0xff] %v552
      %564 = vst [vmem:[#allocation4 + $0x8] sm:$0xff] %v554
      %565 = vst [vmem:[#allocation4 + $0x10] sm:$0xff] %v556
      %566 = vst [vmem:[#allocation4 + $0x18] sm:$0xff] %v558
      %v567 = vld [vmem:[#allocation2 + $0x4] sm:$0xff]
      %v568 = vld [vmem:[#allocation2 + $0xc] sm:$0xff]
      %v569 = vld [vmem:[#allocation2 + $0x14] sm:$0xff]
      %v570 = vld [vmem:[#allocation2 + $0x1c] sm:$0xff]
      %571 = vst [vmem:[#allocation4 + $0x20] sm:$0xff] %v567
      %572 = vst [vmem:[#allocation4 + $0x28] sm:$0xff] %v568
      %573 = vst [vmem:[#allocation4 + $0x30] sm:$0xff] %v569
      %574 = vst [vmem:[#allocation4 + $0x38] sm:$0xff] %v570
      %v575 = vld [vmem:[#allocation2 + $0x4] sm:$0xff]
      %v576 = vld [vmem:[#allocation2 + $0xc] sm:$0xff]
      %v577 = vld [vmem:[#allocation2 + $0x14] sm:$0xff]
      %v578 = vld [vmem:[#allocation2 + $0x1c] sm:$0xff]
      %v579 = vld [vmem:[#allocation2 + $0x24] sm:$0xf]
      %585 = vrot.lane.b32.xlu0 %v575, 127
      %v586 = vpop.permute.xlu0 %585
      %587 = vrot.lane.b32.xlu0 %v576, 127
      %v588 = vpop.permute.xlu0 %587
      %589 = vrot.lane.b32.xlu0 %v577, 127
      %v590 = vpop.permute.xlu0 %589
      %591 = vrot.lane.b32.xlu0 %v578, 127
      %v592 = vpop.permute.xlu0 %591
      %593 = vrot.lane.b32.xlu0 %v579, 127
      %v594 = vpop.permute.xlu0 %593
      %v595 = vrot.slane %v586, 4
      %v596 = vrot.slane %v588, 4
      %v597 = vrot.slane %v590, 4
      %v598 = vrot.slane %v592, 4
      %v599 = vrot.slane %v594, 4
      %v600 = vsel %vm549, %v595, %v596
      %vm601 = vcmask 1039360
      %v602 = vsel %vm601, %v586, %v600
      %v603 = vsel %vm549, %v596, %v597
      %v604 = vsel %vm601, %v588, %v603
      %v605 = vsel %vm549, %v597, %v598
      %v606 = vsel %vm601, %v590, %v605
      %v607 = vsel %vm549, %v598, %v599
      %v608 = vsel %vm601, %v592, %v607
      %613 = vst [vmem:[#allocation4 + $0x40] sm:$0xff] %v602
      %614 = vst [vmem:[#allocation4 + $0x48] sm:$0xff] %v604
      %615 = vst [vmem:[#allocation4 + $0x50] sm:$0xff] %v606
      %616 = vst [vmem:[#allocation4 + $0x58] sm:$0xff] %v608
      %v617 = vld [vmem:[#allocation2 + $0x4] sm:$0xff]
      %v618 = vld [vmem:[#allocation2 + $0xc] sm:$0xff]
      %v619 = vld [vmem:[#allocation2 + $0x14] sm:$0xff]
      %v620 = vld [vmem:[#allocation2 + $0x1c] sm:$0xff]
      %v621 = vld [vmem:[#allocation2 + $0x24] sm:$0xf]
      %627 = vrot.lane.b32.xlu0 %v617, 1
      %v628 = vpop.permute.xlu0 %627
      %629 = vrot.lane.b32.xlu0 %v618, 1
      %v630 = vpop.permute.xlu0 %629
      %631 = vrot.lane.b32.xlu0 %v619, 1
      %v632 = vpop.permute.xlu0 %631
      %633 = vrot.lane.b32.xlu0 %v620, 1
      %v634 = vpop.permute.xlu0 %633
      %635 = vrot.lane.b32.xlu0 %v621, 1
      %v636 = vpop.permute.xlu0 %635
      %v637 = vrot.slane %v628, 4
      %v638 = vrot.slane %v630, 4
      %v639 = vrot.slane %v632, 4
      %v640 = vrot.slane %v634, 4
      %v641 = vrot.slane %v636, 4
      %v642 = vsel %vm549, %v637, %v638
      %v643 = vsel %vm551, %v628, %v642
      %v644 = vsel %vm549, %v638, %v639
      %v645 = vsel %vm551, %v630, %v644
      %v646 = vsel %vm549, %v639, %v640
      %v647 = vsel %vm551, %v632, %v646
      %v648 = vsel %vm549, %v640, %v641
      %v649 = vsel %vm551, %v634, %v648
      %654 = vst [vmem:[#allocation4 + $0x60] sm:$0xff] %v643
      %655 = vst [vmem:[#allocation4 + $0x68] sm:$0xff] %v645
      %656 = vst [vmem:[#allocation4 + $0x70] sm:$0xff] %v647
      %657 = vst [vmem:[#allocation4 + $0x78] sm:$0xff] %v649
      %v658 = vld [vmem:[#allocation2 + $0x8] sm:$0xff]
      %v659 = vld [vmem:[#allocation2 + $0x10] sm:$0xff]
      %v660 = vld [vmem:[#allocation2 + $0x18] sm:$0xff]
      %v661 = vld [vmem:[#allocation2 + $0x20] sm:$0xff]
      %662 = vst [vmem:[#allocation4 + $0x80] sm:$0xff] %v658
      %663 = vst [vmem:[#allocation4 + $0x88] sm:$0xff] %v659
      %664 = vst [vmem:[#allocation4 + $0x90] sm:$0xff] %v660
      %665 = vst [vmem:[#allocation4 + $0x98] sm:$0xff] %v661
      %v666 = vld [vmem:[#allocation2 + $0x8] sm:$0xff]
      %v667 = vld [vmem:[#allocation2 + $0x10] sm:$0xff]
      %v668 = vld [vmem:[#allocation2 + $0x18] sm:$0xff]
      %v669 = vld [vmem:[#allocation2 + $0x20] sm:$0xff]
      %v670 = vld [vmem:[#allocation2 + $0x28] sm:$0xf]
      %676 = vrot.lane.b32.xlu0 %v666, 127
      %v677 = vpop.permute.xlu0 %676
      %678 = vrot.lane.b32.xlu0 %v667, 127
      %v679 = vpop.permute.xlu0 %678
      %680 = vrot.lane.b32.xlu0 %v668, 127
      %v681 = vpop.permute.xlu0 %680
      %682 = vrot.lane.b32.xlu0 %v669, 127
      %v683 = vpop.permute.xlu0 %682
      %684 = vrot.lane.b32.xlu0 %v670, 127
      %v685 = vpop.permute.xlu0 %684
      %v686 = vrot.slane %v677, 4
      %v687 = vrot.slane %v679, 4
      %v688 = vrot.slane %v681, 4
      %v689 = vrot.slane %v683, 4
      %v690 = vrot.slane %v685, 4
      %v691 = vsel %vm549, %v686, %v687
      %v692 = vsel %vm601, %v677, %v691
      %v693 = vsel %vm549, %v687, %v688
      %v694 = vsel %vm601, %v679, %v693
      %v695 = vsel %vm549, %v688, %v689
      %v696 = vsel %vm601, %v681, %v695
      %v697 = vsel %vm549, %v689, %v690
      %v698 = vsel %vm601, %v683, %v697
      %703 = vst [vmem:[#allocation4 + $0xa0] sm:$0xff] %v692
      %704 = vst [vmem:[#allocation4 + $0xa8] sm:$0xff] %v694
      %705 = vst [vmem:[#allocation4 + $0xb0] sm:$0xff] %v696
      %706 = vst [vmem:[#allocation4 + $0xb8] sm:$0xff] %v698
      %v707 = vld [vmem:[#allocation2 + $0x8] sm:$0xff]
      %v708 = vld [vmem:[#allocation2 + $0x10] sm:$0xff]
      %v709 = vld [vmem:[#allocation2 + $0x18] sm:$0xff]
      %v710 = vld [vmem:[#allocation2 + $0x20] sm:$0xff]
      %v711 = vld [vmem:[#allocation2 + $0x28] sm:$0xf]
      %717 = vrot.lane.b32.xlu0 %v707, 1
      %v718 = vpop.permute.xlu0 %717
      %719 = vrot.lane.b32.xlu0 %v708, 1
      %v720 = vpop.permute.xlu0 %719
      %721 = vrot.lane.b32.xlu0 %v709, 1
      %v722 = vpop.permute.xlu0 %721
      %723 = vrot.lane.b32.xlu0 %v710, 1
      %v724 = vpop.permute.xlu0 %723
      %725 = vrot.lane.b32.xlu0 %v711, 1
      %v726 = vpop.permute.xlu0 %725
      %v727 = vrot.slane %v718, 4
      %v728 = vrot.slane %v720, 4
      %v729 = vrot.slane %v722, 4
      %v730 = vrot.slane %v724, 4
      %v731 = vrot.slane %v726, 4
      %v732 = vsel %vm549, %v727, %v728
      %v733 = vsel %vm551, %v718, %v732
      %v734 = vsel %vm549, %v728, %v729
      %v735 = vsel %vm551, %v720, %v734
      %v736 = vsel %vm549, %v729, %v730
      %v737 = vsel %vm551, %v722, %v736
      %v738 = vsel %vm549, %v730, %v731
      %v739 = vsel %vm551, %v724, %v738
      %744 = vst [vmem:[#allocation4 + $0xc0] sm:$0xff] %v733
      %745 = vst [vmem:[#allocation4 + $0xc8] sm:$0xff] %v735
      %746 = vst [vmem:[#allocation4 + $0xd0] sm:$0xff] %v737
      %747 = vst [vmem:[#allocation4 + $0xd8] sm:$0xff] %v739
      %v748 = vld [vmem:[#allocation2 + $0xc] sm:$0xff]
      %v749 = vld [vmem:[#allocation2 + $0x14] sm:$0xff]
      %v750 = vld [vmem:[#allocation2 + $0x1c] sm:$0xff]
      %v751 = vld [vmem:[#allocation2 + $0x24] sm:$0xff]
      %752 = vst [vmem:[#allocation4 + $0xe0] sm:$0xff] %v748
      %753 = vst [vmem:[#allocation4 + $0xe8] sm:$0xff] %v749
      %754 = vst [vmem:[#allocation4 + $0xf0] sm:$0xff] %v750
      %755 = vst [vmem:[#allocation4 + $0xf8] sm:$0xff] %v751
      %v756 = vld [vmem:[#allocation2 + $0xc] sm:$0xff]
      %v757 = vld [vmem:[#allocation2 + $0x14] sm:$0xff]
      %v758 = vld [vmem:[#allocation2 + $0x1c] sm:$0xff]
      %v759 = vld [vmem:[#allocation2 + $0x24] sm:$0xff]
      %v760 = vld [vmem:[#allocation2 + $0x2c] sm:$0xf]
      %766 = vrot.lane.b32.xlu0 %v756, 127
      %v767 = vpop.permute.xlu0 %766
      %768 = vrot.lane.b32.xlu0 %v757, 127
      %v769 = vpop.permute.xlu0 %768
      %770 = vrot.lane.b32.xlu0 %v758, 127
      %v771 = vpop.permute.xlu0 %770
      %772 = vrot.lane.b32.xlu0 %v759, 127
      %v773 = vpop.permute.xlu0 %772
      %774 = vrot.lane.b32.xlu0 %v760, 127
      %v775 = vpop.permute.xlu0 %774
      %v776 = vrot.slane %v767, 4
      %v777 = vrot.slane %v769, 4
      %v778 = vrot.slane %v771, 4
      %v779 = vrot.slane %v773, 4
      %v780 = vrot.slane %v775, 4
      %v781 = vsel %vm549, %v776, %v777
      %v782 = vsel %vm601, %v767, %v781
      %v783 = vsel %vm549, %v777, %v778
      %v784 = vsel %vm601, %v769, %v783
      %v785 = vsel %vm549, %v778, %v779
      %v786 = vsel %vm601, %v771, %v785
      %v787 = vsel %vm549, %v779, %v780
      %v788 = vsel %vm601, %v773, %v787
      %793 = vst [vmem:[#allocation4 + $0x100] sm:$0xff] %v782
      %794 = vst [vmem:[#allocation4 + $0x108] sm:$0xff] %v784
      %795 = vst [vmem:[#allocation4 + $0x110] sm:$0xff] %v786
      %796 = vst [vmem:[#allocation4 + $0x118] sm:$0xff] %v788
      %v797 = vld [vmem:[#allocation4] sm:$0xff]
      %v798 = vld [vmem:[#allocation4 + $0x8] sm:$0xff]
      %v799 = vld [vmem:[#allocation4 + $0x10] sm:$0xff]
      %v800 = vld [vmem:[#allocation4 + $0x18] sm:$0xff]
      %v801 = vld [vmem:[#allocation4 + $0x20] sm:$0xff]
      %v802 = vld [vmem:[#allocation4 + $0x28] sm:$0xff]
      %v803 = vld [vmem:[#allocation4 + $0x30] sm:$0xff]
      %v804 = vld [vmem:[#allocation4 + $0x38] sm:$0xff]
      %v805 = vld [vmem:[#allocation4 + $0x40] sm:$0xff]
      %v806 = vld [vmem:[#allocation4 + $0x48] sm:$0xff]
      %v807 = vld [vmem:[#allocation4 + $0x50] sm:$0xff]
      %v808 = vld [vmem:[#allocation4 + $0x58] sm:$0xff]
      %v809 = vld [vmem:[#allocation4 + $0x60] sm:$0xff]
      %v810 = vld [vmem:[#allocation4 + $0x68] sm:$0xff]
      %v811 = vld [vmem:[#allocation4 + $0x70] sm:$0xff]
      %v812 = vld [vmem:[#allocation4 + $0x78] sm:$0xff]
      %v813 = vld [vmem:[#allocation4 + $0x80] sm:$0xff]
      %v814 = vld [vmem:[#allocation4 + $0x88] sm:$0xff]
      %v815 = vld [vmem:[#allocation4 + $0x90] sm:$0xff]
      %v816 = vld [vmem:[#allocation4 + $0x98] sm:$0xff]
      %v817 = vld [vmem:[#allocation4 + $0xa0] sm:$0xff]
      %v818 = vld [vmem:[#allocation4 + $0xa8] sm:$0xff]
      %v819 = vld [vmem:[#allocation4 + $0xb0] sm:$0xff]
      %v820 = vld [vmem:[#allocation4 + $0xb8] sm:$0xff]
      %v821 = vld [vmem:[#allocation4 + $0xc0] sm:$0xff]
      %v822 = vld [vmem:[#allocation4 + $0xc8] sm:$0xff]
      %v823 = vld [vmem:[#allocation4 + $0xd0] sm:$0xff]
      %v824 = vld [vmem:[#allocation4 + $0xd8] sm:$0xff]
      %v825 = vld [vmem:[#allocation4 + $0xe0] sm:$0xff]
      %v826 = vld [vmem:[#allocation4 + $0xe8] sm:$0xff]
      %v827 = vld [vmem:[#allocation4 + $0xf0] sm:$0xff]
      %v828 = vld [vmem:[#allocation4 + $0xf8] sm:$0xff]
      %v829 = vld [vmem:[#allocation4 + $0x100] sm:$0xff]
      %v830 = vld [vmem:[#allocation4 + $0x108] sm:$0xff]
      %v831 = vld [vmem:[#allocation4 + $0x110] sm:$0xff]
      %v832 = vld [vmem:[#allocation4 + $0x118] sm:$0xff]
      %834 = vset.pattern.permute.xlu0 0
      %835 = vperm.xlu0 %834, %v523
      %v836 = vpop.permute.xlu0 %835
      %v874 = vunpack.c.l.b16 %v797
      %v875 = vunpack.c.h.b16 %v797
      %v876 = vunpack.c.l.b16 %v798
      %v877 = vunpack.c.h.b16 %v798
      %v878 = vunpack.c.l.b16 %v799
      %v879 = vunpack.c.h.b16 %v799
      %v880 = vunpack.c.l.b16 %v800
      %v881 = vunpack.c.h.b16 %v800
      %v882 = vunpack.c.l.b16 %v801
      %v883 = vunpack.c.h.b16 %v801
      %v884 = vunpack.c.l.b16 %v802
      %v885 = vunpack.c.h.b16 %v802
      %v886 = vunpack.c.l.b16 %v803
      %v887 = vunpack.c.h.b16 %v803
      %v888 = vunpack.c.l.b16 %v804
      %v889 = vunpack.c.h.b16 %v804
      %v890 = vunpack.c.l.b16 %v805
      %v891 = vunpack.c.h.b16 %v805
      %v892 = vunpack.c.l.b16 %v806
      %v893 = vunpack.c.h.b16 %v806
      %v894 = vunpack.c.l.b16 %v807
      %v895 = vunpack.c.h.b16 %v807
      %v896 = vunpack.c.l.b16 %v808
      %v897 = vunpack.c.h.b16 %v808
      %v898 = vunpack.c.l.b16 %v809
      %v899 = vunpack.c.h.b16 %v809
      %v900 = vunpack.c.l.b16 %v810
      %v901 = vunpack.c.h.b16 %v810
      %v902 = vunpack.c.l.b16 %v811
      %v903 = vunpack.c.h.b16 %v811
      %v904 = vunpack.c.l.b16 %v812
      %v905 = vunpack.c.h.b16 %v812
      %v906 = vunpack.c.l.b16 %v813
      %v907 = vunpack.c.h.b16 %v813
      %v908 = vunpack.c.l.b16 %v814
      %v909 = vunpack.c.h.b16 %v814
      %v910 = vunpack.c.l.b16 %v815
      %v911 = vunpack.c.h.b16 %v815
      %v912 = vunpack.c.l.b16 %v816
      %v913 = vunpack.c.h.b16 %v816
      %v914 = vunpack.c.l.b16 %v817
      %v915 = vunpack.c.h.b16 %v817
      %v916 = vunpack.c.l.b16 %v818
      %v917 = vunpack.c.h.b16 %v818
      %v918 = vunpack.c.l.b16 %v819
      %v919 = vunpack.c.h.b16 %v819
      %v920 = vunpack.c.l.b16 %v820
      %v921 = vunpack.c.h.b16 %v820
      %v922 = vunpack.c.l.b16 %v821
      %v923 = vunpack.c.h.b16 %v821
      %v924 = vunpack.c.l.b16 %v822
      %v925 = vunpack.c.h.b16 %v822
      %v926 = vunpack.c.l.b16 %v823
      %v927 = vunpack.c.h.b16 %v823
      %v928 = vunpack.c.l.b16 %v824
      %v929 = vunpack.c.h.b16 %v824
      %v930 = vunpack.c.l.b16 %v825
      %v931 = vunpack.c.h.b16 %v825
      %v932 = vunpack.c.l.b16 %v826
      %v933 = vunpack.c.h.b16 %v826
      %v934 = vunpack.c.l.b16 %v827
      %v935 = vunpack.c.h.b16 %v827
      %v936 = vunpack.c.l.b16 %v828
      %v937 = vunpack.c.h.b16 %v828
      %v938 = vunpack.c.l.b16 %v829
      %v939 = vunpack.c.h.b16 %v829
      %v940 = vunpack.c.l.b16 %v830
      %v941 = vunpack.c.h.b16 %v830
      %v942 = vunpack.c.l.b16 %v831
      %v943 = vunpack.c.h.b16 %v831
      %v944 = vunpack.c.l.b16 %v832
      %v945 = vunpack.c.h.b16 %v832
      %v946 = vpack.c.b16 %v882, %v874
      %v947 = vpack.c.b16 %v883, %v875
      %v948 = vpack.c.b16 %v884, %v876
      %v949 = vpack.c.b16 %v885, %v877
      %v950 = vpack.c.b16 %v886, %v878
      %v951 = vpack.c.b16 %v887, %v879
      %v952 = vpack.c.b16 %v888, %v880
      %v953 = vpack.c.b16 %v889, %v881
      %v954 = vpack.c.b16 %v898, %v890
      %v955 = vpack.c.b16 %v899, %v891
      %v956 = vpack.c.b16 %v900, %v892
      %v957 = vpack.c.b16 %v901, %v893
      %v958 = vpack.c.b16 %v902, %v894
      %v959 = vpack.c.b16 %v903, %v895
      %v960 = vpack.c.b16 %v904, %v896
      %v961 = vpack.c.b16 %v905, %v897
      %v962 = vpack.c.b16 %v914, %v906
      %v963 = vpack.c.b16 %v915, %v907
      %v964 = vpack.c.b16 %v916, %v908
      %v965 = vpack.c.b16 %v917, %v909
      %v966 = vpack.c.b16 %v918, %v910
      %v967 = vpack.c.b16 %v919, %v911
      %v968 = vpack.c.b16 %v920, %v912
      %v969 = vpack.c.b16 %v921, %v913
      %v970 = vpack.c.b16 %v930, %v922
      %v971 = vpack.c.b16 %v931, %v923
      %v972 = vpack.c.b16 %v932, %v924
      %v973 = vpack.c.b16 %v933, %v925
      %v974 = vpack.c.b16 %v934, %v926
      %v975 = vpack.c.b16 %v935, %v927
      %v976 = vpack.c.b16 %v936, %v928
      %v977 = vpack.c.b16 %v937, %v929
      %v978 = vpack.c.b16 %v938, %v938
      %v979 = vpack.c.b16 %v939, %v939
      %v980 = vpack.c.b16 %v940, %v940
      %v981 = vpack.c.b16 %v941, %v941
      %v982 = vpack.c.b16 %v942, %v942
      %v983 = vpack.c.b16 %v943, %v943
      %v984 = vpack.c.b16 %v944, %v944
      %v985 = vpack.c.b16 %v945, %v945
      %vm1018 = vcmask 588800
      %v1020 = vsel %vm1018, %v522, 0
      %vm1022 = vcmask 1043456
      %v1024 = vsel %vm1022, %v978, 0
      %v1027 = vsel %vm1022, %v979, 0
      %v1030 = vsel %vm1022, %v980, 0
      %v1033 = vsel %vm1022, %v981, 0
      %v1036 = vsel %vm1022, %v982, 0
      %v1039 = vsel %vm1022, %v983, 0
      %v1042 = vsel %vm1022, %v984, 0
      %v1045 = vsel %vm1022, %v985, 0
      %1047 = vmatpush.bf16.msra.mxu0 0
      %1048 = vmatpush.bf16.msra.mxu0 0
      %1049 = vmatpush.bf16.msra.mxu0 0
      %1050 = vmatpush.bf16.msra.mxu0 %v1024
      %1051 = vmatpush.bf16.msra.mxu0 %v970
      %1052 = vmatpush.bf16.msra.mxu0 %v962
      %1053 = vmatpush.bf16.msra.mxu0 %v954
      %1054 = vmatpush.bf16.msra.mxu0 %v946
      %1055 = vmatmul.bf16.gmra.mxu0 %v1020
      %v1056 = vpop.f32.mrf.mxu0
      %v1057 = vadd.f32 %v836, %v1056
      %v1058 = vpop.f32.mrf.mxu0
      %1059 = vdwg.mxu0
      %1060 = vmatpush.bf16.msra.mxu0 0
      %1061 = vmatpush.bf16.msra.mxu0 0
      %1062 = vmatpush.bf16.msra.mxu0 0
      %1063 = vmatpush.bf16.msra.mxu0 %v1027
      %1064 = vmatpush.bf16.msra.mxu0 %v971
      %1065 = vmatpush.bf16.msra.mxu0 %v963
      %1066 = vmatpush.bf16.msra.mxu0 %v955
      %1067 = vmatpush.bf16.msra.mxu0 %v947
      %1068 = vmatmul.bf16.gmra.mxu0 %v1020
      %v1069 = vpop.f32.mrf.mxu0
      %v1070 = vadd.f32 %v836, %v1069
      %v1071 = vpop.f32.mrf.mxu0
      %1072 = vdwg.mxu0
      %1073 = vmatpush.bf16.msra.mxu0 0
      %1074 = vmatpush.bf16.msra.mxu0 0
      %1075 = vmatpush.bf16.msra.mxu0 0
      %1076 = vmatpush.bf16.msra.mxu0 %v1030
      %1077 = vmatpush.bf16.msra.mxu0 %v972
      %1078 = vmatpush.bf16.msra.mxu0 %v964
      %1079 = vmatpush.bf16.msra.mxu0 %v956
      %1080 = vmatpush.bf16.msra.mxu0 %v948
      %1081 = vmatmul.bf16.gmra.mxu0 %v1020
      %v1082 = vpop.f32.mrf.mxu0
      %v1083 = vadd.f32 %v836, %v1082
      %v1084 = vpop.f32.mrf.mxu0
      %1085 = vdwg.mxu0
      %1086 = vmatpush.bf16.msra.mxu0 0
      %1087 = vmatpush.bf16.msra.mxu0 0
      %1088 = vmatpush.bf16.msra.mxu0 0
      %1089 = vmatpush.bf16.msra.mxu0 %v1033
      %1090 = vmatpush.bf16.msra.mxu0 %v973
      %1091 = vmatpush.bf16.msra.mxu0 %v965
      %1092 = vmatpush.bf16.msra.mxu0 %v957
      %1093 = vmatpush.bf16.msra.mxu0 %v949
      %1094 = vmatmul.bf16.gmra.mxu0 %v1020
      %v1095 = vpop.f32.mrf.mxu0
      %v1096 = vadd.f32 %v836, %v1095
      %v1097 = vpop.f32.mrf.mxu0
      %1098 = vdwg.mxu0
      %1099 = vmatpush.bf16.msra.mxu0 0
      %1100 = vmatpush.bf16.msra.mxu0 0
      %1101 = vmatpush.bf16.msra.mxu0 0
      %1102 = vmatpush.bf16.msra.mxu0 %v1036
      %1103 = vmatpush.bf16.msra.mxu0 %v974
      %1104 = vmatpush.bf16.msra.mxu0 %v966
      %1105 = vmatpush.bf16.msra.mxu0 %v958
      %1106 = vmatpush.bf16.msra.mxu0 %v950
      %1107 = vmatmul.bf16.gmra.mxu0 %v1020
      %v1108 = vpop.f32.mrf.mxu0
      %v1109 = vadd.f32 %v836, %v1108
      %v1110 = vpop.f32.mrf.mxu0
      %1111 = vdwg.mxu0
      %1112 = vmatpush.bf16.msra.mxu0 0
      %1113 = vmatpush.bf16.msra.mxu0 0
      %1114 = vmatpush.bf16.msra.mxu0 0
      %1115 = vmatpush.bf16.msra.mxu0 %v1039
      %1116 = vmatpush.bf16.msra.mxu0 %v975
      %1117 = vmatpush.bf16.msra.mxu0 %v967
      %1118 = vmatpush.bf16.msra.mxu0 %v959
      %1119 = vmatpush.bf16.msra.mxu0 %v951
      %1120 = vmatmul.bf16.gmra.mxu0 %v1020
      %v1121 = vpop.f32.mrf.mxu0
      %v1122 = vadd.f32 %v836, %v1121
      %v1123 = vpop.f32.mrf.mxu0
      %1124 = vdwg.mxu0
      %1125 = vmatpush.bf16.msra.mxu0 0
      %1126 = vmatpush.bf16.msra.mxu0 0
      %1127 = vmatpush.bf16.msra.mxu0 0
      %1128 = vmatpush.bf16.msra.mxu0 %v1042
      %1129 = vmatpush.bf16.msra.mxu0 %v976
      %1130 = vmatpush.bf16.msra.mxu0 %v968
      %1131 = vmatpush.bf16.msra.mxu0 %v960
      %1132 = vmatpush.bf16.msra.mxu0 %v952
      %1133 = vmatmul.bf16.gmra.mxu0 %v1020
      %v1134 = vpop.f32.mrf.mxu0
      %v1135 = vadd.f32 %v836, %v1134
      %v1136 = vpop.f32.mrf.mxu0
      %1137 = vdwg.mxu0
      %1138 = vmatpush.bf16.msra.mxu0 0
      %1139 = vmatpush.bf16.msra.mxu0 0
      %1140 = vmatpush.bf16.msra.mxu0 0
      %1141 = vmatpush.bf16.msra.mxu0 %v1045
      %1142 = vmatpush.bf16.msra.mxu0 %v977
      %1143 = vmatpush.bf16.msra.mxu0 %v969
      %1144 = vmatpush.bf16.msra.mxu0 %v961
      %1145 = vmatpush.bf16.msra.mxu0 %v953
      %1146 = vmatmul.bf16.gmra.mxu0 %v1020
      %v1147 = vpop.f32.mrf.mxu0
      %v1148 = vadd.f32 %v836, %v1147
      %v1149 = vpop.f32.mrf.mxu0
      %1150 = vdwg.mxu0
      %v1151 = vmax.f32 %v1057, 0.0
      %v1152 = vmax.f32 %v1070, 0.0
      %v1153 = vmax.f32 %v1083, 0.0
      %v1154 = vmax.f32 %v1096, 0.0
      %v1155 = vmax.f32 %v1109, 0.0
      %v1156 = vmax.f32 %v1122, 0.0
      %v1157 = vmax.f32 %v1135, 0.0
      %v1158 = vmax.f32 %v1148, 0.0
      %v1159 = vmin.f32 %v1151, 20.0
      %v1160 = vmin.f32 %v1152, 20.0
      %v1161 = vmin.f32 %v1153, 20.0
      %v1162 = vmin.f32 %v1154, 20.0
      %v1163 = vmin.f32 %v1155, 20.0
      %v1164 = vmin.f32 %v1156, 20.0
      %v1165 = vmin.f32 %v1157, 20.0
      %v1166 = vmin.f32 %v1158, 20.0
      %1167 = vst [vmem:[#allocation3] sm:$0xff] 0
      %1168 = vst [vmem:[#allocation3 + $0x28] sm:$0xff] 0
      %v1169 = vmul.f32 %v1159, %v490
      %v1170 = vmul.f32 %v1160, %v491
      %v1171 = vmul.f32 %v1161, %v492
      %v1172 = vmul.f32 %v1162, %v493
      %v1173 = vmul.f32 %v1163, %v494
      %v1174 = vmul.f32 %v1164, %v495
      %v1175 = vmul.f32 %v1165, %v496
      %v1176 = vmul.f32 %v1166, %v497
      %v1177 = vpack.c.bf16 %v1170, %v1169
      %v1178 = vpack.c.bf16 %v1172, %v1171
      %v1179 = vpack.c.bf16 %v1174, %v1173
      %v1180 = vpack.c.bf16 %v1176, %v1175
      %1181 = vst [vmem:[#allocation3 + $0x8] sm:$0xff] %v1177
      %1182 = vst [vmem:[#allocation3 + $0x10] sm:$0xff] %v1178
      %1183 = vst [vmem:[#allocation3 + $0x18] sm:$0xff] %v1179
      %1184 = vst [vmem:[#allocation3 + $0x20] sm:$0xff] %v1180
      %v1185 = vld [vmem:[%s5] sm:$0xf]
      %v1186 = vld [vmem:[%s6] sm:$0xff]
      %v1187 = vld [vmem:[#allocation3] sm:$0xff]
      %v1188 = vld [vmem:[#allocation3 + $0x8] sm:$0xff]
      %v1189 = vld [vmem:[#allocation3 + $0x10] sm:$0xff]
      %v1190 = vld [vmem:[#allocation3 + $0x18] sm:$0xff]
      %v1191 = vld [vmem:[#allocation3 + $0x20] sm:$0xf]
      %1197 = vrot.lane.b32.xlu0 %v1187, 1
      %v1198 = vpop.permute.xlu0 %1197
      %1199 = vrot.lane.b32.xlu0 %v1188, 1
      %v1200 = vpop.permute.xlu0 %1199
      %1201 = vrot.lane.b32.xlu0 %v1189, 1
      %v1202 = vpop.permute.xlu0 %1201
      %1203 = vrot.lane.b32.xlu0 %v1190, 1
      %v1204 = vpop.permute.xlu0 %1203
      %1205 = vrot.lane.b32.xlu0 %v1191, 1
      %v1206 = vpop.permute.xlu0 %1205
      %v1207 = vrot.slane %v1198, 4
      %v1208 = vrot.slane %v1200, 4
      %v1209 = vrot.slane %v1202, 4
      %v1210 = vrot.slane %v1204, 4
      %v1211 = vrot.slane %v1206, 4
      %v1212 = vsel %vm549, %v1207, %v1208
      %v1213 = vsel %vm551, %v1198, %v1212
      %v1214 = vsel %vm549, %v1208, %v1209
      %v1215 = vsel %vm551, %v1200, %v1214
      %v1216 = vsel %vm549, %v1209, %v1210
      %v1217 = vsel %vm551, %v1202, %v1216
      %v1218 = vsel %vm549, %v1210, %v1211
      %v1219 = vsel %vm551, %v1204, %v1218
      %1224 = vst [vmem:[#allocation4] sm:$0xff] %v1213
      %1225 = vst [vmem:[#allocation4 + $0x8] sm:$0xff] %v1215
      %1226 = vst [vmem:[#allocation4 + $0x10] sm:$0xff] %v1217
      %1227 = vst [vmem:[#allocation4 + $0x18] sm:$0xff] %v1219
      %v1228 = vld [vmem:[#allocation3 + $0x4] sm:$0xff]
      %v1229 = vld [vmem:[#allocation3 + $0xc] sm:$0xff]
      %v1230 = vld [vmem:[#allocation3 + $0x14] sm:$0xff]
      %v1231 = vld [vmem:[#allocation3 + $0x1c] sm:$0xff]
      %1232 = vst [vmem:[#allocation4 + $0x20] sm:$0xff] %v1228
      %1233 = vst [vmem:[#allocation4 + $0x28] sm:$0xff] %v1229
      %1234 = vst [vmem:[#allocation4 + $0x30] sm:$0xff] %v1230
      %1235 = vst [vmem:[#allocation4 + $0x38] sm:$0xff] %v1231
      %v1236 = vld [vmem:[#allocation3 + $0x4] sm:$0xff]
      %v1237 = vld [vmem:[#allocation3 + $0xc] sm:$0xff]
      %v1238 = vld [vmem:[#allocation3 + $0x14] sm:$0xff]
      %v1239 = vld [vmem:[#allocation3 + $0x1c] sm:$0xff]
      %v1240 = vld [vmem:[#allocation3 + $0x24] sm:$0xf]
      %1246 = vrot.lane.b32.xlu0 %v1236, 127
      %v1247 = vpop.permute.xlu0 %1246
      %1248 = vrot.lane.b32.xlu0 %v1237, 127
      %v1249 = vpop.permute.xlu0 %1248
      %1250 = vrot.lane.b32.xlu0 %v1238, 127
      %v1251 = vpop.permute.xlu0 %1250
      %1252 = vrot.lane.b32.xlu0 %v1239, 127
      %v1253 = vpop.permute.xlu0 %1252
      %1254 = vrot.lane.b32.xlu0 %v1240, 127
      %v1255 = vpop.permute.xlu0 %1254
      %v1256 = vrot.slane %v1247, 4
      %v1257 = vrot.slane %v1249, 4
      %v1258 = vrot.slane %v1251, 4
      %v1259 = vrot.slane %v1253, 4
      %v1260 = vrot.slane %v1255, 4
      %v1261 = vsel %vm549, %v1256, %v1257
      %v1262 = vsel %vm601, %v1247, %v1261
      %v1263 = vsel %vm549, %v1257, %v1258
      %v1264 = vsel %vm601, %v1249, %v1263
      %v1265 = vsel %vm549, %v1258, %v1259
      %v1266 = vsel %vm601, %v1251, %v1265
      %v1267 = vsel %vm549, %v1259, %v1260
      %v1268 = vsel %vm601, %v1253, %v1267
      %1273 = vst [vmem:[#allocation4 + $0x40] sm:$0xff] %v1262
      %1274 = vst [vmem:[#allocation4 + $0x48] sm:$0xff] %v1264
      %1275 = vst [vmem:[#allocation4 + $0x50] sm:$0xff] %v1266
      %1276 = vst [vmem:[#allocation4 + $0x58] sm:$0xff] %v1268
      %v1277 = vld [vmem:[#allocation3 + $0x4] sm:$0xff]
      %v1278 = vld [vmem:[#allocation3 + $0xc] sm:$0xff]
      %v1279 = vld [vmem:[#allocation3 + $0x14] sm:$0xff]
      %v1280 = vld [vmem:[#allocation3 + $0x1c] sm:$0xff]
      %v1281 = vld [vmem:[#allocation3 + $0x24] sm:$0xf]
      %1287 = vrot.lane.b32.xlu0 %v1277, 1
      %v1288 = vpop.permute.xlu0 %1287
      %1289 = vrot.lane.b32.xlu0 %v1278, 1
      %v1290 = vpop.permute.xlu0 %1289
      %1291 = vrot.lane.b32.xlu0 %v1279, 1
      %v1292 = vpop.permute.xlu0 %1291
      %1293 = vrot.lane.b32.xlu0 %v1280, 1
      %v1294 = vpop.permute.xlu0 %1293
      %1295 = vrot.lane.b32.xlu0 %v1281, 1
      %v1296 = vpop.permute.xlu0 %1295
      %v1297 = vrot.slane %v1288, 4
      %v1298 = vrot.slane %v1290, 4
      %v1299 = vrot.slane %v1292, 4
      %v1300 = vrot.slane %v1294, 4
      %v1301 = vrot.slane %v1296, 4
      %v1302 = vsel %vm549, %v1297, %v1298
      %v1303 = vsel %vm551, %v1288, %v1302
      %v1304 = vsel %vm549, %v1298, %v1299
      %v1305 = vsel %vm551, %v1290, %v1304
      %v1306 = vsel %vm549, %v1299, %v1300
      %v1307 = vsel %vm551, %v1292, %v1306
      %v1308 = vsel %vm549, %v1300, %v1301
      %v1309 = vsel %vm551, %v1294, %v1308
      %1314 = vst [vmem:[#allocation4 + $0x60] sm:$0xff] %v1303
      %1315 = vst [vmem:[#allocation4 + $0x68] sm:$0xff] %v1305
      %1316 = vst [vmem:[#allocation4 + $0x70] sm:$0xff] %v1307
      %1317 = vst [vmem:[#allocation4 + $0x78] sm:$0xff] %v1309
      %v1318 = vld [vmem:[#allocation3 + $0x8] sm:$0xff]
      %v1319 = vld [vmem:[#allocation3 + $0x10] sm:$0xff]
      %v1320 = vld [vmem:[#allocation3 + $0x18] sm:$0xff]
      %v1321 = vld [vmem:[#allocation3 + $0x20] sm:$0xff]
      %1322 = vst [vmem:[#allocation4 + $0x80] sm:$0xff] %v1318
      %1323 = vst [vmem:[#allocation4 + $0x88] sm:$0xff] %v1319
      %1324 = vst [vmem:[#allocation4 + $0x90] sm:$0xff] %v1320
      %1325 = vst [vmem:[#allocation4 + $0x98] sm:$0xff] %v1321
      %v1326 = vld [vmem:[#allocation3 + $0x8] sm:$0xff]
      %v1327 = vld [vmem:[#allocation3 + $0x10] sm:$0xff]
      %v1328 = vld [vmem:[#allocation3 + $0x18] sm:$0xff]
      %v1329 = vld [vmem:[#allocation3 + $0x20] sm:$0xff]
      %v1330 = vld [vmem:[#allocation3 + $0x28] sm:$0xf]
      %1336 = vrot.lane.b32.xlu0 %v1326, 127
      %v1337 = vpop.permute.xlu0 %1336
      %1338 = vrot.lane.b32.xlu0 %v1327, 127
      %v1339 = vpop.permute.xlu0 %1338
      %1340 = vrot.lane.b32.xlu0 %v1328, 127
      %v1341 = vpop.permute.xlu0 %1340
      %1342 = vrot.lane.b32.xlu0 %v1329, 127
      %v1343 = vpop.permute.xlu0 %1342
      %1344 = vrot.lane.b32.xlu0 %v1330, 127
      %v1345 = vpop.permute.xlu0 %1344
      %v1346 = vrot.slane %v1337, 4
      %v1347 = vrot.slane %v1339, 4
      %v1348 = vrot.slane %v1341, 4
      %v1349 = vrot.slane %v1343, 4
      %v1350 = vrot.slane %v1345, 4
      %v1351 = vsel %vm549, %v1346, %v1347
      %v1352 = vsel %vm601, %v1337, %v1351
      %v1353 = vsel %vm549, %v1347, %v1348
      %v1354 = vsel %vm601, %v1339, %v1353
      %v1355 = vsel %vm549, %v1348, %v1349
      %v1356 = vsel %vm601, %v1341, %v1355
      %v1357 = vsel %vm549, %v1349, %v1350
      %v1358 = vsel %vm601, %v1343, %v1357
      %1363 = vst [vmem:[#allocation4 + $0xa0] sm:$0xff] %v1352
      %1364 = vst [vmem:[#allocation4 + $0xa8] sm:$0xff] %v1354
      %1365 = vst [vmem:[#allocation4 + $0xb0] sm:$0xff] %v1356
      %1366 = vst [vmem:[#allocation4 + $0xb8] sm:$0xff] %v1358
      %v1367 = vld [vmem:[#allocation3 + $0x8] sm:$0xff]
      %v1368 = vld [vmem:[#allocation3 + $0x10] sm:$0xff]
      %v1369 = vld [vmem:[#allocation3 + $0x18] sm:$0xff]
      %v1370 = vld [vmem:[#allocation3 + $0x20] sm:$0xff]
      %v1371 = vld [vmem:[#allocation3 + $0x28] sm:$0xf]
      %1377 = vrot.lane.b32.xlu0 %v1367, 1
      %v1378 = vpop.permute.xlu0 %1377
      %1379 = vrot.lane.b32.xlu0 %v1368, 1
      %v1380 = vpop.permute.xlu0 %1379
      %1381 = vrot.lane.b32.xlu0 %v1369, 1
      %v1382 = vpop.permute.xlu0 %1381
      %1383 = vrot.lane.b32.xlu0 %v1370, 1
      %v1384 = vpop.permute.xlu0 %1383
      %1385 = vrot.lane.b32.xlu0 %v1371, 1
      %v1386 = vpop.permute.xlu0 %1385
      %v1387 = vrot.slane %v1378, 4
      %v1388 = vrot.slane %v1380, 4
      %v1389 = vrot.slane %v1382, 4
      %v1390 = vrot.slane %v1384, 4
      %v1391 = vrot.slane %v1386, 4
      %v1392 = vsel %vm549, %v1387, %v1388
      %v1393 = vsel %vm551, %v1378, %v1392
      %v1394 = vsel %vm549, %v1388, %v1389
      %v1395 = vsel %vm551, %v1380, %v1394
      %v1396 = vsel %vm549, %v1389, %v1390
      %v1397 = vsel %vm551, %v1382, %v1396
      %v1398 = vsel %vm549, %v1390, %v1391
      %v1399 = vsel %vm551, %v1384, %v1398
      %1404 = vst [vmem:[#allocation4 + $0xc0] sm:$0xff] %v1393
      %1405 = vst [vmem:[#allocation4 + $0xc8] sm:$0xff] %v1395
      %1406 = vst [vmem:[#allocation4 + $0xd0] sm:$0xff] %v1397
      %1407 = vst [vmem:[#allocation4 + $0xd8] sm:$0xff] %v1399
      %v1408 = vld [vmem:[#allocation3 + $0xc] sm:$0xff]
      %v1409 = vld [vmem:[#allocation3 + $0x14] sm:$0xff]
      %v1410 = vld [vmem:[#allocation3 + $0x1c] sm:$0xff]
      %v1411 = vld [vmem:[#allocation3 + $0x24] sm:$0xff]
      %1412 = vst [vmem:[#allocation4 + $0xe0] sm:$0xff] %v1408
      %1413 = vst [vmem:[#allocation4 + $0xe8] sm:$0xff] %v1409
      %1414 = vst [vmem:[#allocation4 + $0xf0] sm:$0xff] %v1410
      %1415 = vst [vmem:[#allocation4 + $0xf8] sm:$0xff] %v1411
      %v1416 = vld [vmem:[#allocation3 + $0xc] sm:$0xff]
      %v1417 = vld [vmem:[#allocation3 + $0x14] sm:$0xff]
      %v1418 = vld [vmem:[#allocation3 + $0x1c] sm:$0xff]
      %v1419 = vld [vmem:[#allocation3 + $0x24] sm:$0xff]
      %v1420 = vld [vmem:[#allocation3 + $0x2c] sm:$0xf]
      %1426 = vrot.lane.b32.xlu0 %v1416, 127
      %v1427 = vpop.permute.xlu0 %1426
      %1428 = vrot.lane.b32.xlu0 %v1417, 127
      %v1429 = vpop.permute.xlu0 %1428
      %1430 = vrot.lane.b32.xlu0 %v1418, 127
      %v1431 = vpop.permute.xlu0 %1430
      %1432 = vrot.lane.b32.xlu0 %v1419, 127
      %v1433 = vpop.permute.xlu0 %1432
      %1434 = vrot.lane.b32.xlu0 %v1420, 127
      %v1435 = vpop.permute.xlu0 %1434
      %v1436 = vrot.slane %v1427, 4
      %v1437 = vrot.slane %v1429, 4
      %v1438 = vrot.slane %v1431, 4
      %v1439 = vrot.slane %v1433, 4
      %v1440 = vrot.slane %v1435, 4
      %v1441 = vsel %vm549, %v1436, %v1437
      %v1442 = vsel %vm601, %v1427, %v1441
      %v1443 = vsel %vm549, %v1437, %v1438
      %v1444 = vsel %vm601, %v1429, %v1443
      %v1445 = vsel %vm549, %v1438, %v1439
      %v1446 = vsel %vm601, %v1431, %v1445
      %v1447 = vsel %vm549, %v1439, %v1440
      %v1448 = vsel %vm601, %v1433, %v1447
      %1453 = vst [vmem:[#allocation4 + $0x100] sm:$0xff] %v1442
      %1454 = vst [vmem:[#allocation4 + $0x108] sm:$0xff] %v1444
      %1455 = vst [vmem:[#allocation4 + $0x110] sm:$0xff] %v1446
      %1456 = vst [vmem:[#allocation4 + $0x118] sm:$0xff] %v1448
      %v1457 = vld [vmem:[#allocation4] sm:$0xff]
      %v1458 = vld [vmem:[#allocation4 + $0x8] sm:$0xff]
      %v1459 = vld [vmem:[#allocation4 + $0x10] sm:$0xff]
      %v1460 = vld [vmem:[#allocation4 + $0x18] sm:$0xff]
      %v1461 = vld [vmem:[#allocation4 + $0x20] sm:$0xff]
      %v1462 = vld [vmem:[#allocation4 + $0x28] sm:$0xff]
      %v1463 = vld [vmem:[#allocation4 + $0x30] sm:$0xff]
      %v1464 = vld [vmem:[#allocation4 + $0x38] sm:$0xff]
      %v1465 = vld [vmem:[#allocation4 + $0x40] sm:$0xff]
      %v1466 = vld [vmem:[#allocation4 + $0x48] sm:$0xff]
      %v1467 = vld [vmem:[#allocation4 + $0x50] sm:$0xff]
      %v1468 = vld [vmem:[#allocation4 + $0x58] sm:$0xff]
      %v1469 = vld [vmem:[#allocation4 + $0x60] sm:$0xff]
      %v1470 = vld [vmem:[#allocation4 + $0x68] sm:$0xff]
      %v1471 = vld [vmem:[#allocation4 + $0x70] sm:$0xff]
      %v1472 = vld [vmem:[#allocation4 + $0x78] sm:$0xff]
      %v1473 = vld [vmem:[#allocation4 + $0x80] sm:$0xff]
      %v1474 = vld [vmem:[#allocation4 + $0x88] sm:$0xff]
      %v1475 = vld [vmem:[#allocation4 + $0x90] sm:$0xff]
      %v1476 = vld [vmem:[#allocation4 + $0x98] sm:$0xff]
      %v1477 = vld [vmem:[#allocation4 + $0xa0] sm:$0xff]
      %v1478 = vld [vmem:[#allocation4 + $0xa8] sm:$0xff]
      %v1479 = vld [vmem:[#allocation4 + $0xb0] sm:$0xff]
      %v1480 = vld [vmem:[#allocation4 + $0xb8] sm:$0xff]
      %v1481 = vld [vmem:[#allocation4 + $0xc0] sm:$0xff]
      %v1482 = vld [vmem:[#allocation4 + $0xc8] sm:$0xff]
      %v1483 = vld [vmem:[#allocation4 + $0xd0] sm:$0xff]
      %v1484 = vld [vmem:[#allocation4 + $0xd8] sm:$0xff]
      %v1485 = vld [vmem:[#allocation4 + $0xe0] sm:$0xff]
      %v1486 = vld [vmem:[#allocation4 + $0xe8] sm:$0xff]
      %v1487 = vld [vmem:[#allocation4 + $0xf0] sm:$0xff]
      %v1488 = vld [vmem:[#allocation4 + $0xf8] sm:$0xff]
      %v1489 = vld [vmem:[#allocation4 + $0x100] sm:$0xff]
      %v1490 = vld [vmem:[#allocation4 + $0x108] sm:$0xff]
      %v1491 = vld [vmem:[#allocation4 + $0x110] sm:$0xff]
      %v1492 = vld [vmem:[#allocation4 + $0x118] sm:$0xff]
      %1494 = vset.pattern.permute.xlu0 0
      %1495 = vperm.xlu0 %1494, %v1186
      %v1496 = vpop.permute.xlu0 %1495
      %v1534 = vunpack.c.l.b16 %v1457
      %v1535 = vunpack.c.h.b16 %v1457
      %v1536 = vunpack.c.l.b16 %v1458
      %v1537 = vunpack.c.h.b16 %v1458
      %v1538 = vunpack.c.l.b16 %v1459
      %v1539 = vunpack.c.h.b16 %v1459
      %v1540 = vunpack.c.l.b16 %v1460
      %v1541 = vunpack.c.h.b16 %v1460
      %v1542 = vunpack.c.l.b16 %v1461
      %v1543 = vunpack.c.h.b16 %v1461
      %v1544 = vunpack.c.l.b16 %v1462
      %v1545 = vunpack.c.h.b16 %v1462
      %v1546 = vunpack.c.l.b16 %v1463
      %v1547 = vunpack.c.h.b16 %v1463
      %v1548 = vunpack.c.l.b16 %v1464
      %v1549 = vunpack.c.h.b16 %v1464
      %v1550 = vunpack.c.l.b16 %v1465
      %v1551 = vunpack.c.h.b16 %v1465
      %v1552 = vunpack.c.l.b16 %v1466
      %v1553 = vunpack.c.h.b16 %v1466
      %v1554 = vunpack.c.l.b16 %v1467
      %v1555 = vunpack.c.h.b16 %v1467
      %v1556 = vunpack.c.l.b16 %v1468
      %v1557 = vunpack.c.h.b16 %v1468
      %v1558 = vunpack.c.l.b16 %v1469
      %v1559 = vunpack.c.h.b16 %v1469
      %v1560 = vunpack.c.l.b16 %v1470
      %v1561 = vunpack.c.h.b16 %v1470
      %v1562 = vunpack.c.l.b16 %v1471
      %v1563 = vunpack.c.h.b16 %v1471
      %v1564 = vunpack.c.l.b16 %v1472
      %v1565 = vunpack.c.h.b16 %v1472
      %v1566 = vunpack.c.l.b16 %v1473
      %v1567 = vunpack.c.h.b16 %v1473
      %v1568 = vunpack.c.l.b16 %v1474
      %v1569 = vunpack.c.h.b16 %v1474
      %v1570 = vunpack.c.l.b16 %v1475
      %v1571 = vunpack.c.h.b16 %v1475
      %v1572 = vunpack.c.l.b16 %v1476
      %v1573 = vunpack.c.h.b16 %v1476
      %v1574 = vunpack.c.l.b16 %v1477
      %v1575 = vunpack.c.h.b16 %v1477
      %v1576 = vunpack.c.l.b16 %v1478
      %v1577 = vunpack.c.h.b16 %v1478
      %v1578 = vunpack.c.l.b16 %v1479
      %v1579 = vunpack.c.h.b16 %v1479
      %v1580 = vunpack.c.l.b16 %v1480
      %v1581 = vunpack.c.h.b16 %v1480
      %v1582 = vunpack.c.l.b16 %v1481
      %v1583 = vunpack.c.h.b16 %v1481
      %v1584 = vunpack.c.l.b16 %v1482
      %v1585 = vunpack.c.h.b16 %v1482
      %v1586 = vunpack.c.l.b16 %v1483
      %v1587 = vunpack.c.h.b16 %v1483
      %v1588 = vunpack.c.l.b16 %v1484
      %v1589 = vunpack.c.h.b16 %v1484
      %v1590 = vunpack.c.l.b16 %v1485
      %v1591 = vunpack.c.h.b16 %v1485
      %v1592 = vunpack.c.l.b16 %v1486
      %v1593 = vunpack.c.h.b16 %v1486
      %v1594 = vunpack.c.l.b16 %v1487
      %v1595 = vunpack.c.h.b16 %v1487
      %v1596 = vunpack.c.l.b16 %v1488
      %v1597 = vunpack.c.h.b16 %v1488
      %v1598 = vunpack.c.l.b16 %v1489
      %v1599 = vunpack.c.h.b16 %v1489
      %v1600 = vunpack.c.l.b16 %v1490
      %v1601 = vunpack.c.h.b16 %v1490
      %v1602 = vunpack.c.l.b16 %v1491
      %v1603 = vunpack.c.h.b16 %v1491
      %v1604 = vunpack.c.l.b16 %v1492
      %v1605 = vunpack.c.h.b16 %v1492
      %v1606 = vpack.c.b16 %v1542, %v1534
      %v1607 = vpack.c.b16 %v1543, %v1535
      %v1608 = vpack.c.b16 %v1544, %v1536
      %v1609 = vpack.c.b16 %v1545, %v1537
      %v1610 = vpack.c.b16 %v1546, %v1538
      %v1611 = vpack.c.b16 %v1547, %v1539
      %v1612 = vpack.c.b16 %v1548, %v1540
      %v1613 = vpack.c.b16 %v1549, %v1541
      %v1614 = vpack.c.b16 %v1558, %v1550
      %v1615 = vpack.c.b16 %v1559, %v1551
      %v1616 = vpack.c.b16 %v1560, %v1552
      %v1617 = vpack.c.b16 %v1561, %v1553
      %v1618 = vpack.c.b16 %v1562, %v1554
      %v1619 = vpack.c.b16 %v1563, %v1555
      %v1620 = vpack.c.b16 %v1564, %v1556
      %v1621 = vpack.c.b16 %v1565, %v1557
      %v1622 = vpack.c.b16 %v1574, %v1566
      %v1623 = vpack.c.b16 %v1575, %v1567
      %v1624 = vpack.c.b16 %v1576, %v1568
      %v1625 = vpack.c.b16 %v1577, %v1569
      %v1626 = vpack.c.b16 %v1578, %v1570
      %v1627 = vpack.c.b16 %v1579, %v1571
      %v1628 = vpack.c.b16 %v1580, %v1572
      %v1629 = vpack.c.b16 %v1581, %v1573
      %v1630 = vpack.c.b16 %v1590, %v1582
      %v1631 = vpack.c.b16 %v1591, %v1583
      %v1632 = vpack.c.b16 %v1592, %v1584
      %v1633 = vpack.c.b16 %v1593, %v1585
      %v1634 = vpack.c.b16 %v1594, %v1586
      %v1635 = vpack.c.b16 %v1595, %v1587
      %v1636 = vpack.c.b16 %v1596, %v1588
      %v1637 = vpack.c.b16 %v1597, %v1589
      %v1638 = vpack.c.b16 %v1598, %v1598
      %v1639 = vpack.c.b16 %v1599, %v1599
      %v1640 = vpack.c.b16 %v1600, %v1600
      %v1641 = vpack.c.b16 %v1601, %v1601
      %v1642 = vpack.c.b16 %v1602, %v1602
      %v1643 = vpack.c.b16 %v1603, %v1603
      %v1644 = vpack.c.b16 %v1604, %v1604
      %v1645 = vpack.c.b16 %v1605, %v1605
      %v1679 = vsel %vm1018, %v1185, 0
      %v1682 = vsel %vm1022, %v1638, 0
      %v1685 = vsel %vm1022, %v1639, 0
      %v1688 = vsel %vm1022, %v1640, 0
      %v1691 = vsel %vm1022, %v1641, 0
      %v1694 = vsel %vm1022, %v1642, 0
      %v1697 = vsel %vm1022, %v1643, 0
      %v1700 = vsel %vm1022, %v1644, 0
      %v1703 = vsel %vm1022, %v1645, 0
      %1705 = vmatpush.bf16.msra.mxu0 0
      %1706 = vmatpush.bf16.msra.mxu0 0
      %1707 = vmatpush.bf16.msra.mxu0 0
      %1708 = vmatpush.bf16.msra.mxu0 %v1682
      %1709 = vmatpush.bf16.msra.mxu0 %v1630
      %1710 = vmatpush.bf16.msra.mxu0 %v1622
      %1711 = vmatpush.bf16.msra.mxu0 %v1614
      %1712 = vmatpush.bf16.msra.mxu0 %v1606
      %1713 = vmatmul.bf16.gmra.mxu0 %v1679
      %v1714 = vpop.f32.mrf.mxu0
      %v1715 = vadd.f32 %v1496, %v1714
      %v1716 = vpop.f32.mrf.mxu0
      %1717 = vdwg.mxu0
      %1718 = vmatpush.bf16.msra.mxu0 0
      %1719 = vmatpush.bf16.msra.mxu0 0
      %1720 = vmatpush.bf16.msra.mxu0 0
      %1721 = vmatpush.bf16.msra.mxu0 %v1685
      %1722 = vmatpush.bf16.msra.mxu0 %v1631
      %1723 = vmatpush.bf16.msra.mxu0 %v1623
      %1724 = vmatpush.bf16.msra.mxu0 %v1615
      %1725 = vmatpush.bf16.msra.mxu0 %v1607
      %1726 = vmatmul.bf16.gmra.mxu0 %v1679
      %v1727 = vpop.f32.mrf.mxu0
      %v1728 = vadd.f32 %v1496, %v1727
      %v1729 = vpop.f32.mrf.mxu0
      %1730 = vdwg.mxu0
      %1731 = vmatpush.bf16.msra.mxu0 0
      %1732 = vmatpush.bf16.msra.mxu0 0
      %1733 = vmatpush.bf16.msra.mxu0 0
      %1734 = vmatpush.bf16.msra.mxu0 %v1688
      %1735 = vmatpush.bf16.msra.mxu0 %v1632
      %1736 = vmatpush.bf16.msra.mxu0 %v1624
      %1737 = vmatpush.bf16.msra.mxu0 %v1616
      %1738 = vmatpush.bf16.msra.mxu0 %v1608
      %1739 = vmatmul.bf16.gmra.mxu0 %v1679
      %v1740 = vpop.f32.mrf.mxu0
      %v1741 = vadd.f32 %v1496, %v1740
      %v1742 = vpop.f32.mrf.mxu0
      %1743 = vdwg.mxu0
      %1744 = vmatpush.bf16.msra.mxu0 0
      %1745 = vmatpush.bf16.msra.mxu0 0
      %1746 = vmatpush.bf16.msra.mxu0 0
      %1747 = vmatpush.bf16.msra.mxu0 %v1691
      %1748 = vmatpush.bf16.msra.mxu0 %v1633
      %1749 = vmatpush.bf16.msra.mxu0 %v1625
      %1750 = vmatpush.bf16.msra.mxu0 %v1617
      %1751 = vmatpush.bf16.msra.mxu0 %v1609
      %1752 = vmatmul.bf16.gmra.mxu0 %v1679
      %v1753 = vpop.f32.mrf.mxu0
      %v1754 = vadd.f32 %v1496, %v1753
      %v1755 = vpop.f32.mrf.mxu0
      %1756 = vdwg.mxu0
      %1757 = vmatpush.bf16.msra.mxu0 0
      %1758 = vmatpush.bf16.msra.mxu0 0
      %1759 = vmatpush.bf16.msra.mxu0 0
      %1760 = vmatpush.bf16.msra.mxu0 %v1694
      %1761 = vmatpush.bf16.msra.mxu0 %v1634
      %1762 = vmatpush.bf16.msra.mxu0 %v1626
      %1763 = vmatpush.bf16.msra.mxu0 %v1618
      %1764 = vmatpush.bf16.msra.mxu0 %v1610
      %1765 = vmatmul.bf16.gmra.mxu0 %v1679
      %v1766 = vpop.f32.mrf.mxu0
      %v1767 = vadd.f32 %v1496, %v1766
      %v1768 = vpop.f32.mrf.mxu0
      %1769 = vdwg.mxu0
      %1770 = vmatpush.bf16.msra.mxu0 0
      %1771 = vmatpush.bf16.msra.mxu0 0
      %1772 = vmatpush.bf16.msra.mxu0 0
      %1773 = vmatpush.bf16.msra.mxu0 %v1697
      %1774 = vmatpush.bf16.msra.mxu0 %v1635
      %1775 = vmatpush.bf16.msra.mxu0 %v1627
      %1776 = vmatpush.bf16.msra.mxu0 %v1619
      %1777 = vmatpush.bf16.msra.mxu0 %v1611
      %1778 = vmatmul.bf16.gmra.mxu0 %v1679
      %v1779 = vpop.f32.mrf.mxu0
      %v1780 = vadd.f32 %v1496, %v1779
      %v1781 = vpop.f32.mrf.mxu0
      %1782 = vdwg.mxu0
      %1783 = vmatpush.bf16.msra.mxu0 0
      %1784 = vmatpush.bf16.msra.mxu0 0
      %1785 = vmatpush.bf16.msra.mxu0 0
      %1786 = vmatpush.bf16.msra.mxu0 %v1700
      %1787 = vmatpush.bf16.msra.mxu0 %v1636
      %1788 = vmatpush.bf16.msra.mxu0 %v1628
      %1789 = vmatpush.bf16.msra.mxu0 %v1620
      %1790 = vmatpush.bf16.msra.mxu0 %v1612
      %1791 = vmatmul.bf16.gmra.mxu0 %v1679
      %v1792 = vpop.f32.mrf.mxu0
      %v1793 = vadd.f32 %v1496, %v1792
      %v1794 = vpop.f32.mrf.mxu0
      %1795 = vdwg.mxu0
      %1796 = vmatpush.bf16.msra.mxu0 0
      %1797 = vmatpush.bf16.msra.mxu0 0
      %1798 = vmatpush.bf16.msra.mxu0 0
      %1799 = vmatpush.bf16.msra.mxu0 %v1703
      %1800 = vmatpush.bf16.msra.mxu0 %v1637
      %1801 = vmatpush.bf16.msra.mxu0 %v1629
      %1802 = vmatpush.bf16.msra.mxu0 %v1621
      %1803 = vmatpush.bf16.msra.mxu0 %v1613
      %1804 = vmatmul.bf16.gmra.mxu0 %v1679
      %v1805 = vpop.f32.mrf.mxu0
      %v1806 = vadd.f32 %v1496, %v1805
      %v1807 = vpop.f32.mrf.mxu0
      %1808 = vdwg.mxu0
      %v1809 = vmax.f32 %v1715, 0.0
      %v1810 = vmax.f32 %v1728, 0.0
      %v1811 = vmax.f32 %v1741, 0.0
      %v1812 = vmax.f32 %v1754, 0.0
      %v1813 = vmax.f32 %v1767, 0.0
      %v1814 = vmax.f32 %v1780, 0.0
      %v1815 = vmax.f32 %v1793, 0.0
      %v1816 = vmax.f32 %v1806, 0.0
      %v1817 = vmin.f32 %v1809, 20.0
      %v1818 = vmin.f32 %v1810, 20.0
      %v1819 = vmin.f32 %v1811, 20.0
      %v1820 = vmin.f32 %v1812, 20.0
      %v1821 = vmin.f32 %v1813, 20.0
      %v1822 = vmin.f32 %v1814, 20.0
      %v1823 = vmin.f32 %v1815, 20.0
      %v1824 = vmin.f32 %v1816, 20.0
      %1825 = vst [vmem:[%s305] sm:$0xff] %v1817
      %1826 = vst [vmem:[%s305 + $0x8] sm:$0xff] %v1818
      %1827 = vst [vmem:[%s305 + $0x10] sm:$0xff] %v1819
      %1828 = vst [vmem:[%s305 + $0x18] sm:$0xff] %v1820
      %1829 = vst [vmem:[%s305 + $0x20] sm:$0xff] %v1821
      %1830 = vst [vmem:[%s305 + $0x28] sm:$0xff] %v1822
      %1831 = vst [vmem:[%s305 + $0x30] sm:$0xff] %v1823
      %1832 = vst [vmem:[%s305 + $0x38] sm:$0xff] %v1824
      %p1833 = scmp.lt.s32.totalorder %s19, 1
      %s1834 = scalar_select %p1833, %s19, 1
      %s1835 = smul.addr %s1834, 8
      %s1836 = smul.addr %s1835, 8
      %s1837 = scalar_lea.vmem %s8, %s1836
      // Predicated region
      $region53: #{encoder_forward.1} parent=51 // pred_check
        %p1838 = pneg %p210
      $region54: #{encoder_forward.1} parent=51 // pred_check_branch
        %1840 = sbr.rel (%p1838) target = $region56
      $region55: #{encoder_forward.1} parent=51 // pred_region
        _
      $region56: #{encoder_forward.1} parent=51 // pred_fallthru
        _
    $region52: #{encoder_forward.1} parent=5 // pred_fallthru
      _
    %p1841 = scmp.le.s32.totalorder 2, %s14
    // Predicated region
    $region57: #{encoder_forward.1} parent=5 // pred_check
      %p1842 = pneg %p1841
    $region58: #{encoder_forward.1} parent=5 // pred_check_branch
      %1844 = sbr.rel (%p1842) target = $region60
    $region59: #{encoder_forward.1} parent=5 // pred_region
      %s1845 = ssub.s32 %s14, 2
      // Predicated region
      $region61: #{encoder_forward.1} parent=59 // pred_check
        %p1846 = pneg %p216
      $region62: #{encoder_forward.1} parent=59 // pred_check_branch
        %1848 = sbr.rel (%p1846) target = $region64
      $region63: #{encoder_forward.1} parent=59 // pred_region
        %p1849 = scmp.lt.s32.totalorder %s20, 1
        %s1850 = scalar_select %p1849, %s20, 1
        %s1851 = smul.addr %s1850, 8
        %s1852 = smul.addr %s1851, 8
        %s1853 = scalar_lea.vmem %s8, %s1852
      $region64: #{encoder_forward.1} parent=59 // pred_fallthru
        _
    $region60: #{encoder_forward.1} parent=5 // pred_fallthru
      _
  $region6: #{encoder_forward.1} parent=0 // loop_footer
    %s18 = sadd.s32 1, %s14
  $region7: #{encoder_forward.1} parent=0 // loop_footer_branch
    %13 = sbr.rel target = $region3
  $region8: #{encoder_forward.1} parent=0 // loop_exit
    _

</llo_original>
